<compile_context>
chip_gen: v6e
topology: v6e:2x2x1
jax: 0.10.0
libtpu: 0.0.40
codegen_flags: <defaults>
</compile_context>

<pallas_src>
import math

import jax
import jax.numpy as jnp
from jax.experimental import pallas as pl
from jax.experimental.pallas import tpu as pltpu


# ----------------------------------------------------------------------------
# Packed-weight layout helpers (shared by wrapper and kernel)
# ----------------------------------------------------------------------------
def _ru16(n):
    return (n + 15) // 16 * 16


def _wpack_offsets(I, H):
    """Row offsets of the sub-matrices inside the single bf16 weight slab."""
    r_ihx = 0                       # (2I, 8H)  layer-0 input proj (fwd rows | bwd rows), striped
    r_hh0 = _ru16(2 * I)            # (2H, 8H)  layer-0 recurrent, block-diag, striped
    r_ih1 = _ru16(r_hh0 + 2 * H)    # (2H, 4H)  layer-1(bwd) input proj, cols [i|f|o|g]
    r_hh1 = _ru16(r_ih1 + 2 * H)    # (H,  4H)  layer-1(bwd) recurrent,  cols [i|f|o|g]
    return r_ihx, r_hh0, r_ih1, r_hh1


# ----------------------------------------------------------------------------
# Fused Pallas kernel: layer-0 (both directions) -> layer-1 (backward) -> collapsed fc head
# ----------------------------------------------------------------------------
def fused_lstm_fc_kernel(x_ref, w_ref, c_ref, o_ref, xg_scr, y_scr):
    S, B, I = x_ref.shape
    H8 = w_ref.shape[1]
    H = H8 // 8
    H2, H3, H4, H6 = 2 * H, 3 * H, 4 * H, 6 * H
    r_ihx, r_hh0, r_ih1, r_hh1 = _wpack_offsets(I, H)

    # -------- loop-invariant weights: loaded once, bf16 ----------------------------------
    w0_hh = w_ref[r_hh0:r_hh0 + H2, :]            # (2H, 8H) block-diag, striped gate cols
    w1_hh = w_ref[r_hh1:r_hh1 + H, 0:H4]          # (H, 4H)

    # -------- layer 0: one (S*B, 2I) @ (2I, 8H) MXU matmul for BOTH directions ------------
    # LHS row block s = [x[s] | x[S-1-s]]  -> the bwd half is already time-aligned, so every
    # recurrent step reads a single contiguous (B, 8H) slab.  Built once, off the hot loop.
    x = x_ref[...]
    x2 = jnp.concatenate(
        [jnp.concatenate([x[s], x[S - 1 - s]], axis=-1) for s in range(S)], axis=0
    ).astype(jnp.bfloat16)                        # (S*B, 2I)
    w0_ihx = w_ref[r_ihx:r_ihx + 2 * I, :]        # (2I, 8H) bf16
    b0 = c_ref[0:1, :]                            # (1, 8H)  f32
    xg_scr[...] = jnp.dot(x2, w0_ihx, preferred_element_type=jnp.float32) + b0

    # -------- layer 0 recurrence: fwd & bwd fused, statically unrolled --------------------
    # gate column stripes: i[0:2H)  f[2H:4H)  o[4H:6H)  g[6H:8H), each [fwd H | bwd H].
    # step 0 peeled: h = c = 0  ->  skip the recurrent matmul and the f*c term.
    g0 = xg_scr[0:B, :]
    sg = jax.nn.sigmoid(g0[:, 0:H6])
    gg = jnp.tanh(g0[:, H6:])
    c = sg[:, 0:H2] * gg
    h = sg[:, H4:H6] * jnp.tanh(c)
    y_scr[0:B, 0:H] = h[:, 0:H]                            # y_fwd(t=0)
    y_scr[(S - 1) * B:S * B, H:H2] = h[:, H:H2]            # y_bwd(t=S-1)
    for s in range(1, S):                                  # static unroll (S small & known)
        pre = xg_scr[s * B:(s + 1) * B, :]
        gates = pre + jnp.dot(h.astype(jnp.bfloat16), w0_hh,
                              preferred_element_type=jnp.float32)
        sg = jax.nn.sigmoid(gates[:, 0:H6])                # one EUP pass over i/f/o stripes
        gg = jnp.tanh(gates[:, H6:])                       # tanh only on the g stripe
        c = sg[:, H2:H4] * c + sg[:, 0:H2] * gg            # both directions in one (B,2H) op
        h = sg[:, H4:H6] * jnp.tanh(c)
        y_scr[s * B:(s + 1) * B, 0:H] = h[:, 0:H]          # y_fwd(t=s)
        y_scr[(S - 1 - s) * B:(S - s) * B, H:H2] = h[:, H:H2]   # y_bwd(t=S-1-s)

    # -------- layer 1 (backward direction only; its final hidden == h_n[-1]) --------------
    # single merged K=2H input-projection matmul over the time-aligned bidirectional outputs
    w1_ih = w_ref[r_ih1:r_ih1 + H2, 0:H4]
    b1 = c_ref[1:2, 0:H4]
    xg1 = jnp.dot(y_scr[...].astype(jnp.bfloat16), w1_ih,
                  preferred_element_type=jnp.float32) + b1          # (S*B, 4H)

    # gate columns: i[0:H) f[H:2H) o[2H:3H) g[3H:4H).  First step (t = S-1) peeled.
    g1 = xg1[(S - 1) * B:S * B, :]
    sg = jax.nn.sigmoid(g1[:, 0:H3])
    gg = jnp.tanh(g1[:, H3:])
    c1 = sg[:, 0:H] * gg
    h1 = sg[:, H2:H3] * jnp.tanh(c1)
    for t in range(S - 2, -1, -1):
        gates = xg1[t * B:(t + 1) * B, :] + jnp.dot(
            h1.astype(jnp.bfloat16), w1_hh, preferred_element_type=jnp.float32)
        sg = jax.nn.sigmoid(gates[:, 0:H3])
        gg = jnp.tanh(gates[:, H3:])
        c1 = sg[:, H:H2] * c1 + sg[:, 0:H] * gg
        h1 = sg[:, H2:H3] * jnp.tanh(c1)

    # -------- collapsed fc -> fc2 -> fc3 head: VPU multiply + lane reduce ------------------
    wc = c_ref[2:3, 0:H]                          # (1, H)  = W1ᵀ W2ᵀ W3ᵀ
    bc = c_ref[2:3, H:H + 1]                      # (1, 1)
    o_ref[...] = jnp.sum(h1 * wc, axis=-1, keepdims=True) + bc


# ----------------------------------------------------------------------------
# One-time weight packing (hoisted out of the forward path — call once at init)
# ----------------------------------------------------------------------------
def pack_params(params):
    w0f_ih, w0f_hh, b0f_ih, b0f_hh = params["l0_fwd"]
    w0b_ih, w0b_hh, b0b_ih, b0b_hh = params["l0_bwd"]
    w1b_ih, w1b_hh, b1b_ih, b1b_hh = params["l1_bwd"]
    w1, b1, w2, b2, w3, b3 = params["fc"]
    H = w0f_hh.shape[1]
    I = w0f_ih.shape[1]
    H2, H4, H8 = 2 * H, 4 * H, 8 * H

    def stripe(block_t, direction):
        # block_t: (rows, 4H), PyTorch column blocks [i|f|g|o] -> striped
        # [i_f i_b | f_f f_b | o_f o_b | g_f g_b]  (zeros in the other direction's half).
        rows = block_t.shape[0]
        out = jnp.zeros((rows, H8), jnp.float32)
        d = direction * H
        src = [block_t[:, 0:H], block_t[:, H:2 * H],
               block_t[:, 3 * H:4 * H], block_t[:, 2 * H:3 * H]]      # i, f, o, g
        for k, blk in enumerate(src):
            out = out.at[:, 2 * k * H + d:2 * k * H + d + H].set(blk)
        return out

    w0_ihx = jnp.concatenate([stripe(w0f_ih.T, 0), stripe(w0b_ih.T, 1)], axis=0)   # (2I, 8H)
    w0_hh = jnp.concatenate([stripe(w0f_hh.T, 0), stripe(w0b_hh.T, 1)], axis=0)    # (2H, 8H)
    b0 = (stripe((b0f_ih + b0f_hh).reshape(1, H4), 0)
          + stripe((b0b_ih + b0b_hh).reshape(1, H4), 1))                           # (1, 8H)

    def reorder_ifog(m):  # cols [i|f|g|o] -> [i|f|o|g]
        return jnp.concatenate([m[:, 0:2 * H], m[:, 3 * H:4 * H], m[:, 2 * H:3 * H]], axis=-1)

    w1_ih = reorder_ifog(w1b_ih.T)                                      # (2H, 4H)
    w1_hh_p = reorder_ifog(w1b_hh.T)                                    # (H, 4H)
    b1v = reorder_ifog((b1b_ih + b1b_hh).reshape(1, H4))                # (1, 4H)

    # Collapsed FC head (no activations between linears -> exact).
    wc = (w1.T @ w2.T @ w3.T).reshape(H)                                # (H,)
    bc = ((b1 @ w2.T + b2) @ w3.T + b3)[0]                              # scalar

    r_ihx, r_hh0, r_ih1, r_hh1 = _wpack_offsets(I, H)
    rows_total = _ru16(r_hh1 + H)

    wpack = jnp.zeros((rows_total, H8), jnp.float32)
    wpack = wpack.at[r_ihx:r_ihx + 2 * I, :].set(w0_ihx)
    wpack = wpack.at[r_hh0:r_hh0 + H2, :].set(w0_hh)
    wpack = wpack.at[r_ih1:r_ih1 + H2, 0:H4].set(w1_ih)
    wpack = wpack.at[r_hh1:r_hh1 + H, 0:H4].set(w1_hh_p)
    wpack = wpack.astype(jnp.bfloat16)                                  # bf16 MXU operands

    cpack = jnp.zeros((3, H8), jnp.float32)
    cpack = cpack.at[0, :].set(b0[0])
    cpack = cpack.at[1, 0:H4].set(b1v[0])
    cpack = cpack.at[2, 0:H].set(wc)
    cpack = cpack.at[2, H].set(bc)

    return {"wpack": wpack, "cpack": cpack, "hidden": H}


# ----------------------------------------------------------------------------
# Forward: nothing but the single fused pallas_call
# ----------------------------------------------------------------------------
@jax.jit
def lstm_model_forward(x, packed):
    S, B, I = x.shape
    wpack, cpack = packed["wpack"], packed["cpack"]
    Wr, H8 = wpack.shape
    H = H8 // 8

    out = pl.pallas_call(
        fused_lstm_fc_kernel,
        out_shape=jax.ShapeDtypeStruct((B, 1), jnp.float32),
        grid=(1,),
        in_specs=[
            pl.BlockSpec((S, B, I), lambda i: (0, 0, 0)),
            pl.BlockSpec((Wr, H8), lambda i: (0, 0)),
            pl.BlockSpec((3, H8), lambda i: (0, 0)),
        ],
        out_specs=pl.BlockSpec((B, 1), lambda i: (0, 0)),
        scratch_shapes=[
            pltpu.VMEM((S * B, H8), jnp.float32),      # layer-0 input projections (striped)
            pltpu.VMEM((S * B, 2 * H), jnp.float32),   # time-aligned bidirectional outputs
        ],
        compiler_params=pltpu.CompilerParams(dimension_semantics=("arbitrary",)),
    )(x, wpack, cpack)
    return out.reshape(-1)                             # .view(-1) -> (B,)


# ----------------------------------------------------------------------------
# Pure-JAX reference (numerical sanity check, built from the raw params)
# ----------------------------------------------------------------------------
def lstm_dir_ref(x, w_ih, w_hh, b_ih, b_hh, reverse):
    S, B, _ = x.shape
    H = w_hh.shape[1]
    h = jnp.zeros((B, H), jnp.float32)
    c = jnp.zeros((B, H), jnp.float32)
    ys = [None] * S
    order = range(S - 1, -1, -1) if reverse else range(S)
    for t in order:
        gates = x[t] @ w_ih.T + h @ w_hh.T + b_ih + b_hh
        i = jax.nn.sigmoid(gates[:, :H])
        f = jax.nn.sigmoid(gates[:, H:2 * H])
        g = jnp.tanh(gates[:, 2 * H:3 * H])
        o = jax.nn.sigmoid(gates[:, 3 * H:])
        c = f * c + i * g
        h = o * jnp.tanh(c)
        ys[t] = h
    return jnp.stack(ys, axis=0), h


def model_ref(x, params):
    y0f, _ = lstm_dir_ref(x, *params["l0_fwd"], reverse=False)
    y0b, _ = lstm_dir_ref(x, *params["l0_bwd"], reverse=True)
    y0 = jnp.concatenate([y0f, y0b], axis=-1)
    _, h_last = lstm_dir_ref(y0, *params["l1_bwd"], reverse=True)
    w1, b1, w2, b2, w3, b3 = params["fc"]
    out = ((h_last @ w1.T + b1) @ w2.T + b2) @ w3.T + b3
    return out.reshape(-1)


# ----------------------------------------------------------------------------
# Parameter init (deterministic, synthetic)
# ----------------------------------------------------------------------------
def init_params(key, input_size, hidden_size):
    keys = iter(jax.random.split(key, 64))

    def u(shape, bound):
        return jax.random.uniform(next(keys), shape, jnp.float32, -bound, bound)

    H = hidden_size
    k_lstm = 1.0 / math.sqrt(H)

    def lstm_layer(in_dim):
        return (u((4 * H, in_dim), k_lstm), u((4 * H, H), k_lstm),
                u((4 * H,), k_lstm), u((4 * H,), k_lstm))

    params = {
        "l0_fwd": lstm_layer(input_size),
        "l0_bwd": lstm_layer(input_size),
        "l1_fwd": lstm_layer(2 * H),   # part of the module but does not feed h_n[-1]
        "l1_bwd": lstm_layer(2 * H),
        "fc": (
            u((256, H), 1.0 / math.sqrt(H)), u((256,), 1.0 / math.sqrt(H)),
            u((128, 256), 1.0 / math.sqrt(256)), u((128,), 1.0 / math.sqrt(256)),
            u((1, 128), 1.0 / math.sqrt(128)), u((1,), 1.0 / math.sqrt(128)),
        ),
    }
    return params


# ----------------------------------------------------------------------------
if __name__ == "__main__":
    SEQ, BATCH, INPUT, HIDDEN = 8, 8, 16, 32

    key = jax.random.PRNGKey(0)
    k_x, k_p = jax.random.split(key)
    x = jax.random.normal(k_x, (SEQ, BATCH, INPUT), jnp.float32)
    params = init_params(k_p, INPUT, HIDDEN)

    packed = pack_params(params)               # one-time packing, hoisted out of the forward
    packed = jax.tree_util.tree_map(jax.block_until_ready, packed)

    out = lstm_model_forward(x, packed)
    out = jax.block_until_ready(out)

    ref = model_ref(x, params)
    assert out.shape == (BATCH,), out.shape
    assert bool(jnp.all(jnp.isfinite(out)))
    assert bool(jnp.allclose(out, ref, rtol=2e-2, atol=2e-2)), (out, ref)

    print("KERNEL_OK")
</pallas_src>

<mosaic_0001>
module attributes {stable_mosaic.version = 11 : i64} {
  func.func @fused_lstm_fc_kernel(%arg0: i32, %arg1: memref<8x8x16xf32, #tpu.memory_space<vmem>>, %arg2: memref<192x256xbf16, #tpu.memory_space<vmem>>, %arg3: memref<3x256xf32, #tpu.memory_space<vmem>>, %arg4: memref<8x1xf32, #tpu.memory_space<vmem>>, %arg5: memref<64x256xf32, #tpu.memory_space<vmem>>, %arg6: memref<64x64xf32, #tpu.memory_space<vmem>>) attributes {dimension_semantics = [#tpu.dimension_semantics<arbitrary>], iteration_bounds = array<i64: 1>, scalar_prefetch = 0 : i64, scratch_operands = 2 : i64, tpu.core_type = #tpu.core_type<tc>, window_params = [{pipeline_mode = #tpu.pipeline_mode<synchronous>, transform_indices = @transform_0, window_bounds = array<i64: 8, 8, 16>}, {pipeline_mode = #tpu.pipeline_mode<synchronous>, transform_indices = @transform_1, window_bounds = array<i64: 192, 256>}, {pipeline_mode = #tpu.pipeline_mode<synchronous>, transform_indices = @transform_2, window_bounds = array<i64: 3, 256>}, {pipeline_mode = #tpu.pipeline_mode<synchronous>, transform_indices = @transform_3, window_bounds = array<i64: 8, 1>}]} {
    %c32 = arith.constant 32 : index
    %c0 = arith.constant 0 : index
    %0 = vector.load %arg2[%c32, %c0] : memref<192x256xbf16, #tpu.memory_space<vmem>>, vector<64x256xbf16>
    %c160 = arith.constant 160 : index
    %c0_0 = arith.constant 0 : index
    %1 = vector.load %arg2[%c160, %c0_0] : memref<192x256xbf16, #tpu.memory_space<vmem>>, vector<32x128xbf16>
    %c0_1 = arith.constant 0 : index
    %c0_2 = arith.constant 0 : index
    %c0_3 = arith.constant 0 : index
    %2 = vector.load %arg1[%c0_1, %c0_2, %c0_3] : memref<8x8x16xf32, #tpu.memory_space<vmem>>, vector<8x8x16xf32>
    %3 = vector.extract_strided_slice %2 {offsets = [0, 0, 0], sizes = [1, 8, 16], strides = [1, 1, 1]} : vector<8x8x16xf32> to vector<1x8x16xf32>
    %4 = vector.shape_cast %3 : vector<1x8x16xf32> to vector<8x16xf32>
    %5 = vector.extract_strided_slice %2 {offsets = [7, 0, 0], sizes = [1, 8, 16], strides = [1, 1, 1]} : vector<8x8x16xf32> to vector<1x8x16xf32>
    %6 = vector.shape_cast %5 : vector<1x8x16xf32> to vector<8x16xf32>
    %7 = tpu.concatenate %4, %6 in 1 : vector<8x16xf32>, vector<8x16xf32> -> vector<8x32xf32>
    %8 = vector.extract_strided_slice %2 {offsets = [1, 0, 0], sizes = [1, 8, 16], strides = [1, 1, 1]} : vector<8x8x16xf32> to vector<1x8x16xf32>
    %9 = vector.shape_cast %8 : vector<1x8x16xf32> to vector<8x16xf32>
    %10 = vector.extract_strided_slice %2 {offsets = [6, 0, 0], sizes = [1, 8, 16], strides = [1, 1, 1]} : vector<8x8x16xf32> to vector<1x8x16xf32>
    %11 = vector.shape_cast %10 : vector<1x8x16xf32> to vector<8x16xf32>
    %12 = tpu.concatenate %9, %11 in 1 : vector<8x16xf32>, vector<8x16xf32> -> vector<8x32xf32>
    %13 = vector.extract_strided_slice %2 {offsets = [2, 0, 0], sizes = [1, 8, 16], strides = [1, 1, 1]} : vector<8x8x16xf32> to vector<1x8x16xf32>
    %14 = vector.shape_cast %13 : vector<1x8x16xf32> to vector<8x16xf32>
    %15 = vector.extract_strided_slice %2 {offsets = [5, 0, 0], sizes = [1, 8, 16], strides = [1, 1, 1]} : vector<8x8x16xf32> to vector<1x8x16xf32>
    %16 = vector.shape_cast %15 : vector<1x8x16xf32> to vector<8x16xf32>
    %17 = tpu.concatenate %14, %16 in 1 : vector<8x16xf32>, vector<8x16xf32> -> vector<8x32xf32>
    %18 = vector.extract_strided_slice %2 {offsets = [3, 0, 0], sizes = [1, 8, 16], strides = [1, 1, 1]} : vector<8x8x16xf32> to vector<1x8x16xf32>
    %19 = vector.shape_cast %18 : vector<1x8x16xf32> to vector<8x16xf32>
    %20 = vector.extract_strided_slice %2 {offsets = [4, 0, 0], sizes = [1, 8, 16], strides = [1, 1, 1]} : vector<8x8x16xf32> to vector<1x8x16xf32>
    %21 = vector.shape_cast %20 : vector<1x8x16xf32> to vector<8x16xf32>
    %22 = tpu.concatenate %19, %21 in 1 : vector<8x16xf32>, vector<8x16xf32> -> vector<8x32xf32>
    %23 = vector.extract_strided_slice %2 {offsets = [4, 0, 0], sizes = [1, 8, 16], strides = [1, 1, 1]} : vector<8x8x16xf32> to vector<1x8x16xf32>
    %24 = vector.shape_cast %23 : vector<1x8x16xf32> to vector<8x16xf32>
    %25 = vector.extract_strided_slice %2 {offsets = [3, 0, 0], sizes = [1, 8, 16], strides = [1, 1, 1]} : vector<8x8x16xf32> to vector<1x8x16xf32>
    %26 = vector.shape_cast %25 : vector<1x8x16xf32> to vector<8x16xf32>
    %27 = tpu.concatenate %24, %26 in 1 : vector<8x16xf32>, vector<8x16xf32> -> vector<8x32xf32>
    %28 = vector.extract_strided_slice %2 {offsets = [5, 0, 0], sizes = [1, 8, 16], strides = [1, 1, 1]} : vector<8x8x16xf32> to vector<1x8x16xf32>
    %29 = vector.shape_cast %28 : vector<1x8x16xf32> to vector<8x16xf32>
    %30 = vector.extract_strided_slice %2 {offsets = [2, 0, 0], sizes = [1, 8, 16], strides = [1, 1, 1]} : vector<8x8x16xf32> to vector<1x8x16xf32>
    %31 = vector.shape_cast %30 : vector<1x8x16xf32> to vector<8x16xf32>
    %32 = tpu.concatenate %29, %31 in 1 : vector<8x16xf32>, vector<8x16xf32> -> vector<8x32xf32>
    %33 = vector.extract_strided_slice %2 {offsets = [6, 0, 0], sizes = [1, 8, 16], strides = [1, 1, 1]} : vector<8x8x16xf32> to vector<1x8x16xf32>
    %34 = vector.shape_cast %33 : vector<1x8x16xf32> to vector<8x16xf32>
    %35 = vector.extract_strided_slice %2 {offsets = [1, 0, 0], sizes = [1, 8, 16], strides = [1, 1, 1]} : vector<8x8x16xf32> to vector<1x8x16xf32>
    %36 = vector.shape_cast %35 : vector<1x8x16xf32> to vector<8x16xf32>
    %37 = tpu.concatenate %34, %36 in 1 : vector<8x16xf32>, vector<8x16xf32> -> vector<8x32xf32>
    %38 = vector.extract_strided_slice %2 {offsets = [7, 0, 0], sizes = [1, 8, 16], strides = [1, 1, 1]} : vector<8x8x16xf32> to vector<1x8x16xf32>
    %39 = vector.shape_cast %38 : vector<1x8x16xf32> to vector<8x16xf32>
    %40 = vector.extract_strided_slice %2 {offsets = [0, 0, 0], sizes = [1, 8, 16], strides = [1, 1, 1]} : vector<8x8x16xf32> to vector<1x8x16xf32>
    %41 = vector.shape_cast %40 : vector<1x8x16xf32> to vector<8x16xf32>
    %42 = tpu.concatenate %39, %41 in 1 : vector<8x16xf32>, vector<8x16xf32> -> vector<8x32xf32>
    %43 = tpu.concatenate %7, %12, %17, %22, %27, %32, %37, %42 in 0 : vector<8x32xf32>, vector<8x32xf32>, vector<8x32xf32>, vector<8x32xf32>, vector<8x32xf32>, vector<8x32xf32>, vector<8x32xf32>, vector<8x32xf32> -> vector<64x32xf32>
    %44 = arith.truncf %43 : vector<64x32xf32> to vector<64x32xbf16>
    %c0_4 = arith.constant 0 : index
    %c0_5 = arith.constant 0 : index
    %45 = vector.load %arg2[%c0_4, %c0_5] : memref<192x256xbf16, #tpu.memory_space<vmem>>, vector<32x256xbf16>
    %c0_6 = arith.constant 0 : index
    %c0_7 = arith.constant 0 : index
    %46 = vector.load %arg3[%c0_6, %c0_7] : memref<3x256xf32, #tpu.memory_space<vmem>>, vector<1x256xf32>
    %cst = arith.constant dense<0.000000e+00> : vector<64x256xf32>
    %47 = tpu.matmul %44, %45, %cst {dimension_numbers = #tpu.dot_dimension_numbers<[1], [0], [0], [1], [0, 0, 1, 1], [], []>} : vector<64x32xbf16>, vector<32x256xbf16>, vector<64x256xf32> -> vector<64x256xf32>
    %48 = vector.broadcast %46 : vector<1x256xf32> to vector<64x256xf32>
    %49 = arith.addf %47, %48 : vector<64x256xf32>
    %c0_8 = arith.constant 0 : index
    %c0_9 = arith.constant 0 : index
    %50 = vector.load %arg5[%c0_8, %c0_9] : memref<64x256xf32, #tpu.memory_space<vmem>>, vector<64x256xf32>
    tpu.vector_store %arg5[%c0_8, %c0_9], %49 {strides = array<i32>} : memref<64x256xf32, #tpu.memory_space<vmem>>, vector<64x256xf32>,
    %c0_10 = arith.constant 0 : index
    %c0_11 = arith.constant 0 : index
    %51 = vector.load %arg5[%c0_10, %c0_11] : memref<64x256xf32, #tpu.memory_space<vmem>>, vector<8x256xf32>
    %52 = vector.extract_strided_slice %51 {offsets = [0, 0], sizes = [8, 192], strides = [1, 1]} : vector<8x256xf32> to vector<8x192xf32>
    %53 = arith.negf %52 : vector<8x192xf32>
    %54 = math.exp %53 : vector<8x192xf32>
    %cst_12 = arith.constant 1.000000e+00 : f32
    %55 = vector.broadcast %cst_12 : f32 to vector<8x192xf32>
    %56 = arith.addf %55, %54 : vector<8x192xf32>
    %57 = arith.divf %55, %56 : vector<8x192xf32>
    %58 = vector.extract_strided_slice %51 {offsets = [0, 192], sizes = [8, 64], strides = [1, 1]} : vector<8x256xf32> to vector<8x64xf32>
    %59 = math.tanh %58 : vector<8x64xf32>
    %60 = vector.extract_strided_slice %57 {offsets = [0, 0], sizes = [8, 64], strides = [1, 1]} : vector<8x192xf32> to vector<8x64xf32>
    %61 = arith.mulf %60, %59 : vector<8x64xf32>
    %62 = vector.extract_strided_slice %57 {offsets = [0, 128], sizes = [8, 64], strides = [1, 1]} : vector<8x192xf32> to vector<8x64xf32>
    %63 = math.tanh %61 : vector<8x64xf32>
    %64 = arith.mulf %62, %63 : vector<8x64xf32>
    %65 = vector.extract_strided_slice %64 {offsets = [0, 0], sizes = [8, 32], strides = [1, 1]} : vector<8x64xf32> to vector<8x32xf32>
    %c0_13 = arith.constant 0 : index
    %c0_14 = arith.constant 0 : index
    %66 = vector.load %arg6[%c0_13, %c0_14] : memref<64x64xf32, #tpu.memory_space<vmem>>, vector<8x32xf32>
    tpu.vector_store %arg6[%c0_13, %c0_14], %65 {strides = array<i32>} : memref<64x64xf32, #tpu.memory_space<vmem>>, vector<8x32xf32>,
    %67 = vector.extract_strided_slice %64 {offsets = [0, 32], sizes = [8, 32], strides = [1, 1]} : vector<8x64xf32> to vector<8x32xf32>
    %c56 = arith.constant 56 : index
    %c32_15 = arith.constant 32 : index
    %68 = vector.load %arg6[%c56, %c32_15] : memref<64x64xf32, #tpu.memory_space<vmem>>, vector<8x32xf32>
    tpu.vector_store %arg6[%c56, %c32_15], %67 {strides = array<i32>} : memref<64x64xf32, #tpu.memory_space<vmem>>, vector<8x32xf32>,
    %c8 = arith.constant 8 : index
    %c0_16 = arith.constant 0 : index
    %69 = vector.load %arg5[%c8, %c0_16] : memref<64x256xf32, #tpu.memory_space<vmem>>, vector<8x256xf32>
    %70 = arith.truncf %64 : vector<8x64xf32> to vector<8x64xbf16>
    %cst_17 = arith.constant dense<0.000000e+00> : vector<8x256xf32>
    %71 = tpu.matmul %70, %0, %cst_17 {dimension_numbers = #tpu.dot_dimension_numbers<[1], [0], [0], [1], [0, 0, 1, 1], [], []>} : vector<8x64xbf16>, vector<64x256xbf16>, vector<8x256xf32> -> vector<8x256xf32>
    %72 = arith.addf %69, %71 : vector<8x256xf32>
    %73 = vector.extract_strided_slice %72 {offsets = [0, 0], sizes = [8, 192], strides = [1, 1]} : vector<8x256xf32> to vector<8x192xf32>
    %74 = arith.negf %73 : vector<8x192xf32>
    %75 = math.exp %74 : vector<8x192xf32>
    %cst_18 = arith.constant 1.000000e+00 : f32
    %76 = vector.broadcast %cst_18 : f32 to vector<8x192xf32>
    %77 = arith.addf %76, %75 : vector<8x192xf32>
    %78 = arith.divf %76, %77 : vector<8x192xf32>
    %79 = vector.extract_strided_slice %72 {offsets = [0, 192], sizes = [8, 64], strides = [1, 1]} : vector<8x256xf32> to vector<8x64xf32>
    %80 = math.tanh %79 : vector<8x64xf32>
    %81 = vector.extract_strided_slice %78 {offsets = [0, 64], sizes = [8, 64], strides = [1, 1]} : vector<8x192xf32> to vector<8x64xf32>
    %82 = arith.mulf %81, %61 : vector<8x64xf32>
    %83 = vector.extract_strided_slice %78 {offsets = [0, 0], sizes = [8, 64], strides = [1, 1]} : vector<8x192xf32> to vector<8x64xf32>
    %84 = arith.mulf %83, %80 : vector<8x64xf32>
    %85 = arith.addf %82, %84 : vector<8x64xf32>
    %86 = vector.extract_strided_slice %78 {offsets = [0, 128], sizes = [8, 64], strides = [1, 1]} : vector<8x192xf32> to vector<8x64xf32>
    %87 = math.tanh %85 : vector<8x64xf32>
    %88 = arith.mulf %86, %87 : vector<8x64xf32>
    %89 = vector.extract_strided_slice %88 {offsets = [0, 0], sizes = [8, 32], strides = [1, 1]} : vector<8x64xf32> to vector<8x32xf32>
    %c8_19 = arith.constant 8 : index
    %c0_20 = arith.constant 0 : index
    %90 = vector.load %arg6[%c8_19, %c0_20] : memref<64x64xf32, #tpu.memory_space<vmem>>, vector<8x32xf32>
    tpu.vector_store %arg6[%c8_19, %c0_20], %89 {strides = array<i32>} : memref<64x64xf32, #tpu.memory_space<vmem>>, vector<8x32xf32>,
    %91 = vector.extract_strided_slice %88 {offsets = [0, 32], sizes = [8, 32], strides = [1, 1]} : vector<8x64xf32> to vector<8x32xf32>
    %c48 = arith.constant 48 : index
    %c32_21 = arith.constant 32 : index
    %92 = vector.load %arg6[%c48, %c32_21] : memref<64x64xf32, #tpu.memory_space<vmem>>, vector<8x32xf32>
    tpu.vector_store %arg6[%c48, %c32_21], %91 {strides = array<i32>} : memref<64x64xf32, #tpu.memory_space<vmem>>, vector<8x32xf32>,
    %c16 = arith.constant 16 : index
    %c0_22 = arith.constant 0 : index
    %93 = vector.load %arg5[%c16, %c0_22] : memref<64x256xf32, #tpu.memory_space<vmem>>, vector<8x256xf32>
    %94 = arith.truncf %88 : vector<8x64xf32> to vector<8x64xbf16>
    %cst_23 = arith.constant dense<0.000000e+00> : vector<8x256xf32>
    %95 = tpu.matmul %94, %0, %cst_23 {dimension_numbers = #tpu.dot_dimension_numbers<[1], [0], [0], [1], [0, 0, 1, 1], [], []>} : vector<8x64xbf16>, vector<64x256xbf16>, vector<8x256xf32> -> vector<8x256xf32>
    %96 = arith.addf %93, %95 : vector<8x256xf32>
    %97 = vector.extract_strided_slice %96 {offsets = [0, 0], sizes = [8, 192], strides = [1, 1]} : vector<8x256xf32> to vector<8x192xf32>
    %98 = arith.negf %97 : vector<8x192xf32>
    %99 = math.exp %98 : vector<8x192xf32>
    %cst_24 = arith.constant 1.000000e+00 : f32
    %100 = vector.broadcast %cst_24 : f32 to vector<8x192xf32>
    %101 = arith.addf %100, %99 : vector<8x192xf32>
    %102 = arith.divf %100, %101 : vector<8x192xf32>
    %103 = vector.extract_strided_slice %96 {offsets = [0, 192], sizes = [8, 64], strides = [1, 1]} : vector<8x256xf32> to vector<8x64xf32>
    %104 = math.tanh %103 : vector<8x64xf32>
    %105 = vector.extract_strided_slice %102 {offsets = [0, 64], sizes = [8, 64], strides = [1, 1]} : vector<8x192xf32> to vector<8x64xf32>
    %106 = arith.mulf %105, %85 : vector<8x64xf32>
    %107 = vector.extract_strided_slice %102 {offsets = [0, 0], sizes = [8, 64], strides = [1, 1]} : vector<8x192xf32> to vector<8x64xf32>
    %108 = arith.mulf %107, %104 : vector<8x64xf32>
    %109 = arith.addf %106, %108 : vector<8x64xf32>
    %110 = vector.extract_strided_slice %102 {offsets = [0, 128], sizes = [8, 64], strides = [1, 1]} : vector<8x192xf32> to vector<8x64xf32>
    %111 = math.tanh %109 : vector<8x64xf32>
    %112 = arith.mulf %110, %111 : vector<8x64xf32>
    %113 = vector.extract_strided_slice %112 {offsets = [0, 0], sizes = [8, 32], strides = [1, 1]} : vector<8x64xf32> to vector<8x32xf32>
    %c16_25 = arith.constant 16 : index
    %c0_26 = arith.constant 0 : index
    %114 = vector.load %arg6[%c16_25, %c0_26] : memref<64x64xf32, #tpu.memory_space<vmem>>, vector<8x32xf32>
    tpu.vector_store %arg6[%c16_25, %c0_26], %113 {strides = array<i32>} : memref<64x64xf32, #tpu.memory_space<vmem>>, vector<8x32xf32>,
    %115 = vector.extract_strided_slice %112 {offsets = [0, 32], sizes = [8, 32], strides = [1, 1]} : vector<8x64xf32> to vector<8x32xf32>
    %c40 = arith.constant 40 : index
    %c32_27 = arith.constant 32 : index
    %116 = vector.load %arg6[%c40, %c32_27] : memref<64x64xf32, #tpu.memory_space<vmem>>, vector<8x32xf32>
    tpu.vector_store %arg6[%c40, %c32_27], %115 {strides = array<i32>} : memref<64x64xf32, #tpu.memory_space<vmem>>, vector<8x32xf32>,
    %c24 = arith.constant 24 : index
    %c0_28 = arith.constant 0 : index
    %117 = vector.load %arg5[%c24, %c0_28] : memref<64x256xf32, #tpu.memory_space<vmem>>, vector<8x256xf32>
    %118 = arith.truncf %112 : vector<8x64xf32> to vector<8x64xbf16>
    %cst_29 = arith.constant dense<0.000000e+00> : vector<8x256xf32>
    %119 = tpu.matmul %118, %0, %cst_29 {dimension_numbers = #tpu.dot_dimension_numbers<[1], [0], [0], [1], [0, 0, 1, 1], [], []>} : vector<8x64xbf16>, vector<64x256xbf16>, vector<8x256xf32> -> vector<8x256xf32>
    %120 = arith.addf %117, %119 : vector<8x256xf32>
    %121 = vector.extract_strided_slice %120 {offsets = [0, 0], sizes = [8, 192], strides = [1, 1]} : vector<8x256xf32> to vector<8x192xf32>
    %122 = arith.negf %121 : vector<8x192xf32>
    %123 = math.exp %122 : vector<8x192xf32>
    %cst_30 = arith.constant 1.000000e+00 : f32
    %124 = vector.broadcast %cst_30 : f32 to vector<8x192xf32>
    %125 = arith.addf %124, %123 : vector<8x192xf32>
    %126 = arith.divf %124, %125 : vector<8x192xf32>
    %127 = vector.extract_strided_slice %120 {offsets = [0, 192], sizes = [8, 64], strides = [1, 1]} : vector<8x256xf32> to vector<8x64xf32>
    %128 = math.tanh %127 : vector<8x64xf32>
    %129 = vector.extract_strided_slice %126 {offsets = [0, 64], sizes = [8, 64], strides = [1, 1]} : vector<8x192xf32> to vector<8x64xf32>
    %130 = arith.mulf %129, %109 : vector<8x64xf32>
    %131 = vector.extract_strided_slice %126 {offsets = [0, 0], sizes = [8, 64], strides = [1, 1]} : vector<8x192xf32> to vector<8x64xf32>
    %132 = arith.mulf %131, %128 : vector<8x64xf32>
    %133 = arith.addf %130, %132 : vector<8x64xf32>
    %134 = vector.extract_strided_slice %126 {offsets = [0, 128], sizes = [8, 64], strides = [1, 1]} : vector<8x192xf32> to vector<8x64xf32>
    %135 = math.tanh %133 : vector<8x64xf32>
    %136 = arith.mulf %134, %135 : vector<8x64xf32>
    %137 = vector.extract_strided_slice %136 {offsets = [0, 0], sizes = [8, 32], strides = [1, 1]} : vector<8x64xf32> to vector<8x32xf32>
    %c24_31 = arith.constant 24 : index
    %c0_32 = arith.constant 0 : index
    %138 = vector.load %arg6[%c24_31, %c0_32] : memref<64x64xf32, #tpu.memory_space<vmem>>, vector<8x32xf32>
    tpu.vector_store %arg6[%c24_31, %c0_32], %137 {strides = array<i32>} : memref<64x64xf32, #tpu.memory_space<vmem>>, vector<8x32xf32>,
    %139 = vector.extract_strided_slice %136 {offsets = [0, 32], sizes = [8, 32], strides = [1, 1]} : vector<8x64xf32> to vector<8x32xf32>
    %c32_33 = arith.constant 32 : index
    %c32_34 = arith.constant 32 : index
    %140 = vector.load %arg6[%c32_33, %c32_34] : memref<64x64xf32, #tpu.memory_space<vmem>>, vector<8x32xf32>
    tpu.vector_store %arg6[%c32_33, %c32_34], %139 {strides = array<i32>} : memref<64x64xf32, #tpu.memory_space<vmem>>, vector<8x32xf32>,
    %c32_35 = arith.constant 32 : index
    %c0_36 = arith.constant 0 : index
    %141 = vector.load %arg5[%c32_35, %c0_36] : memref<64x256xf32, #tpu.memory_space<vmem>>, vector<8x256xf32>
    %142 = arith.truncf %136 : vector<8x64xf32> to vector<8x64xbf16>
    %cst_37 = arith.constant dense<0.000000e+00> : vector<8x256xf32>
    %143 = tpu.matmul %142, %0, %cst_37 {dimension_numbers = #tpu.dot_dimension_numbers<[1], [0], [0], [1], [0, 0, 1, 1], [], []>} : vector<8x64xbf16>, vector<64x256xbf16>, vector<8x256xf32> -> vector<8x256xf32>
    %144 = arith.addf %141, %143 : vector<8x256xf32>
    %145 = vector.extract_strided_slice %144 {offsets = [0, 0], sizes = [8, 192], strides = [1, 1]} : vector<8x256xf32> to vector<8x192xf32>
    %146 = arith.negf %145 : vector<8x192xf32>
    %147 = math.exp %146 : vector<8x192xf32>
    %cst_38 = arith.constant 1.000000e+00 : f32
    %148 = vector.broadcast %cst_38 : f32 to vector<8x192xf32>
    %149 = arith.addf %148, %147 : vector<8x192xf32>
    %150 = arith.divf %148, %149 : vector<8x192xf32>
    %151 = vector.extract_strided_slice %144 {offsets = [0, 192], sizes = [8, 64], strides = [1, 1]} : vector<8x256xf32> to vector<8x64xf32>
    %152 = math.tanh %151 : vector<8x64xf32>
    %153 = vector.extract_strided_slice %150 {offsets = [0, 64], sizes = [8, 64], strides = [1, 1]} : vector<8x192xf32> to vector<8x64xf32>
    %154 = arith.mulf %153, %133 : vector<8x64xf32>
    %155 = vector.extract_strided_slice %150 {offsets = [0, 0], sizes = [8, 64], strides = [1, 1]} : vector<8x192xf32> to vector<8x64xf32>
    %156 = arith.mulf %155, %152 : vector<8x64xf32>
    %157 = arith.addf %154, %156 : vector<8x64xf32>
    %158 = vector.extract_strided_slice %150 {offsets = [0, 128], sizes = [8, 64], strides = [1, 1]} : vector<8x192xf32> to vector<8x64xf32>
    %159 = math.tanh %157 : vector<8x64xf32>
    %160 = arith.mulf %158, %159 : vector<8x64xf32>
    %161 = vector.extract_strided_slice %160 {offsets = [0, 0], sizes = [8, 32], strides = [1, 1]} : vector<8x64xf32> to vector<8x32xf32>
    %c32_39 = arith.constant 32 : index
    %c0_40 = arith.constant 0 : index
    %162 = vector.load %arg6[%c32_39, %c0_40] : memref<64x64xf32, #tpu.memory_space<vmem>>, vector<8x32xf32>
    tpu.vector_store %arg6[%c32_39, %c0_40], %161 {strides = array<i32>} : memref<64x64xf32, #tpu.memory_space<vmem>>, vector<8x32xf32>,
    %163 = vector.extract_strided_slice %160 {offsets = [0, 32], sizes = [8, 32], strides = [1, 1]} : vector<8x64xf32> to vector<8x32xf32>
    %c24_41 = arith.constant 24 : index
    %c32_42 = arith.constant 32 : index
    %164 = vector.load %arg6[%c24_41, %c32_42] : memref<64x64xf32, #tpu.memory_space<vmem>>, vector<8x32xf32>
    tpu.vector_store %arg6[%c24_41, %c32_42], %163 {strides = array<i32>} : memref<64x64xf32, #tpu.memory_space<vmem>>, vector<8x32xf32>,
    %c40_43 = arith.constant 40 : index
    %c0_44 = arith.constant 0 : index
    %165 = vector.load %arg5[%c40_43, %c0_44] : memref<64x256xf32, #tpu.memory_space<vmem>>, vector<8x256xf32>
    %166 = arith.truncf %160 : vector<8x64xf32> to vector<8x64xbf16>
    %cst_45 = arith.constant dense<0.000000e+00> : vector<8x256xf32>
    %167 = tpu.matmul %166, %0, %cst_45 {dimension_numbers = #tpu.dot_dimension_numbers<[1], [0], [0], [1], [0, 0, 1, 1], [], []>} : vector<8x64xbf16>, vector<64x256xbf16>, vector<8x256xf32> -> vector<8x256xf32>
    %168 = arith.addf %165, %167 : vector<8x256xf32>
    %169 = vector.extract_strided_slice %168 {offsets = [0, 0], sizes = [8, 192], strides = [1, 1]} : vector<8x256xf32> to vector<8x192xf32>
    %170 = arith.negf %169 : vector<8x192xf32>
    %171 = math.exp %170 : vector<8x192xf32>
    %cst_46 = arith.constant 1.000000e+00 : f32
    %172 = vector.broadcast %cst_46 : f32 to vector<8x192xf32>
    %173 = arith.addf %172, %171 : vector<8x192xf32>
    %174 = arith.divf %172, %173 : vector<8x192xf32>
    %175 = vector.extract_strided_slice %168 {offsets = [0, 192], sizes = [8, 64], strides = [1, 1]} : vector<8x256xf32> to vector<8x64xf32>
    %176 = math.tanh %175 : vector<8x64xf32>
    %177 = vector.extract_strided_slice %174 {offsets = [0, 64], sizes = [8, 64], strides = [1, 1]} : vector<8x192xf32> to vector<8x64xf32>
    %178 = arith.mulf %177, %157 : vector<8x64xf32>
    %179 = vector.extract_strided_slice %174 {offsets = [0, 0], sizes = [8, 64], strides = [1, 1]} : vector<8x192xf32> to vector<8x64xf32>
    %180 = arith.mulf %179, %176 : vector<8x64xf32>
    %181 = arith.addf %178, %180 : vector<8x64xf32>
    %182 = vector.extract_strided_slice %174 {offsets = [0, 128], sizes = [8, 64], strides = [1, 1]} : vector<8x192xf32> to vector<8x64xf32>
    %183 = math.tanh %181 : vector<8x64xf32>
    %184 = arith.mulf %182, %183 : vector<8x64xf32>
    %185 = vector.extract_strided_slice %184 {offsets = [0, 0], sizes = [8, 32], strides = [1, 1]} : vector<8x64xf32> to vector<8x32xf32>
    %c40_47 = arith.constant 40 : index
    %c0_48 = arith.constant 0 : index
    %186 = vector.load %arg6[%c40_47, %c0_48] : memref<64x64xf32, #tpu.memory_space<vmem>>, vector<8x32xf32>
    tpu.vector_store %arg6[%c40_47, %c0_48], %185 {strides = array<i32>} : memref<64x64xf32, #tpu.memory_space<vmem>>, vector<8x32xf32>,
    %187 = vector.extract_strided_slice %184 {offsets = [0, 32], sizes = [8, 32], strides = [1, 1]} : vector<8x64xf32> to vector<8x32xf32>
    %c16_49 = arith.constant 16 : index
    %c32_50 = arith.constant 32 : index
    %188 = vector.load %arg6[%c16_49, %c32_50] : memref<64x64xf32, #tpu.memory_space<vmem>>, vector<8x32xf32>
    tpu.vector_store %arg6[%c16_49, %c32_50], %187 {strides = array<i32>} : memref<64x64xf32, #tpu.memory_space<vmem>>, vector<8x32xf32>,
    %c48_51 = arith.constant 48 : index
    %c0_52 = arith.constant 0 : index
    %189 = vector.load %arg5[%c48_51, %c0_52] : memref<64x256xf32, #tpu.memory_space<vmem>>, vector<8x256xf32>
    %190 = arith.truncf %184 : vector<8x64xf32> to vector<8x64xbf16>
    %cst_53 = arith.constant dense<0.000000e+00> : vector<8x256xf32>
    %191 = tpu.matmul %190, %0, %cst_53 {dimension_numbers = #tpu.dot_dimension_numbers<[1], [0], [0], [1], [0, 0, 1, 1], [], []>} : vector<8x64xbf16>, vector<64x256xbf16>, vector<8x256xf32> -> vector<8x256xf32>
    %192 = arith.addf %189, %191 : vector<8x256xf32>
    %193 = vector.extract_strided_slice %192 {offsets = [0, 0], sizes = [8, 192], strides = [1, 1]} : vector<8x256xf32> to vector<8x192xf32>
    %194 = arith.negf %193 : vector<8x192xf32>
    %195 = math.exp %194 : vector<8x192xf32>
    %cst_54 = arith.constant 1.000000e+00 : f32
    %196 = vector.broadcast %cst_54 : f32 to vector<8x192xf32>
    %197 = arith.addf %196, %195 : vector<8x192xf32>
    %198 = arith.divf %196, %197 : vector<8x192xf32>
    %199 = vector.extract_strided_slice %192 {offsets = [0, 192], sizes = [8, 64], strides = [1, 1]} : vector<8x256xf32> to vector<8x64xf32>
    %200 = math.tanh %199 : vector<8x64xf32>
    %201 = vector.extract_strided_slice %198 {offsets = [0, 64], sizes = [8, 64], strides = [1, 1]} : vector<8x192xf32> to vector<8x64xf32>
    %202 = arith.mulf %201, %181 : vector<8x64xf32>
    %203 = vector.extract_strided_slice %198 {offsets = [0, 0], sizes = [8, 64], strides = [1, 1]} : vector<8x192xf32> to vector<8x64xf32>
    %204 = arith.mulf %203, %200 : vector<8x64xf32>
    %205 = arith.addf %202, %204 : vector<8x64xf32>
    %206 = vector.extract_strided_slice %198 {offsets = [0, 128], sizes = [8, 64], strides = [1, 1]} : vector<8x192xf32> to vector<8x64xf32>
    %207 = math.tanh %205 : vector<8x64xf32>
    %208 = arith.mulf %206, %207 : vector<8x64xf32>
    %209 = vector.extract_strided_slice %208 {offsets = [0, 0], sizes = [8, 32], strides = [1, 1]} : vector<8x64xf32> to vector<8x32xf32>
    %c48_55 = arith.constant 48 : index
    %c0_56 = arith.constant 0 : index
    %210 = vector.load %arg6[%c48_55, %c0_56] : memref<64x64xf32, #tpu.memory_space<vmem>>, vector<8x32xf32>
    tpu.vector_store %arg6[%c48_55, %c0_56], %209 {strides = array<i32>} : memref<64x64xf32, #tpu.memory_space<vmem>>, vector<8x32xf32>,
    %211 = vector.extract_strided_slice %208 {offsets = [0, 32], sizes = [8, 32], strides = [1, 1]} : vector<8x64xf32> to vector<8x32xf32>
    %c8_57 = arith.constant 8 : index
    %c32_58 = arith.constant 32 : index
    %212 = vector.load %arg6[%c8_57, %c32_58] : memref<64x64xf32, #tpu.memory_space<vmem>>, vector<8x32xf32>
    tpu.vector_store %arg6[%c8_57, %c32_58], %211 {strides = array<i32>} : memref<64x64xf32, #tpu.memory_space<vmem>>, vector<8x32xf32>,
    %c56_59 = arith.constant 56 : index
    %c0_60 = arith.constant 0 : index
    %213 = vector.load %arg5[%c56_59, %c0_60] : memref<64x256xf32, #tpu.memory_space<vmem>>, vector<8x256xf32>
    %214 = arith.truncf %208 : vector<8x64xf32> to vector<8x64xbf16>
    %cst_61 = arith.constant dense<0.000000e+00> : vector<8x256xf32>
    %215 = tpu.matmul %214, %0, %cst_61 {dimension_numbers = #tpu.dot_dimension_numbers<[1], [0], [0], [1], [0, 0, 1, 1], [], []>} : vector<8x64xbf16>, vector<64x256xbf16>, vector<8x256xf32> -> vector<8x256xf32>
    %216 = arith.addf %213, %215 : vector<8x256xf32>
    %217 = vector.extract_strided_slice %216 {offsets = [0, 0], sizes = [8, 192], strides = [1, 1]} : vector<8x256xf32> to vector<8x192xf32>
    %218 = arith.negf %217 : vector<8x192xf32>
    %219 = math.exp %218 : vector<8x192xf32>
    %cst_62 = arith.constant 1.000000e+00 : f32
    %220 = vector.broadcast %cst_62 : f32 to vector<8x192xf32>
    %221 = arith.addf %220, %219 : vector<8x192xf32>
    %222 = arith.divf %220, %221 : vector<8x192xf32>
    %223 = vector.extract_strided_slice %216 {offsets = [0, 192], sizes = [8, 64], strides = [1, 1]} : vector<8x256xf32> to vector<8x64xf32>
    %224 = math.tanh %223 : vector<8x64xf32>
    %225 = vector.extract_strided_slice %222 {offsets = [0, 64], sizes = [8, 64], strides = [1, 1]} : vector<8x192xf32> to vector<8x64xf32>
    %226 = arith.mulf %225, %205 : vector<8x64xf32>
    %227 = vector.extract_strided_slice %222 {offsets = [0, 0], sizes = [8, 64], strides = [1, 1]} : vector<8x192xf32> to vector<8x64xf32>
    %228 = arith.mulf %227, %224 : vector<8x64xf32>
    %229 = arith.addf %226, %228 : vector<8x64xf32>
    %230 = vector.extract_strided_slice %222 {offsets = [0, 128], sizes = [8, 64], strides = [1, 1]} : vector<8x192xf32> to vector<8x64xf32>
    %231 = math.tanh %229 : vector<8x64xf32>
    %232 = arith.mulf %230, %231 : vector<8x64xf32>
    %233 = vector.extract_strided_slice %232 {offsets = [0, 0], sizes = [8, 32], strides = [1, 1]} : vector<8x64xf32> to vector<8x32xf32>
    %c56_63 = arith.constant 56 : index
    %c0_64 = arith.constant 0 : index
    %234 = vector.load %arg6[%c56_63, %c0_64] : memref<64x64xf32, #tpu.memory_space<vmem>>, vector<8x32xf32>
    tpu.vector_store %arg6[%c56_63, %c0_64], %233 {strides = array<i32>} : memref<64x64xf32, #tpu.memory_space<vmem>>, vector<8x32xf32>,
    %235 = vector.extract_strided_slice %232 {offsets = [0, 32], sizes = [8, 32], strides = [1, 1]} : vector<8x64xf32> to vector<8x32xf32>
    %c0_65 = arith.constant 0 : index
    %c32_66 = arith.constant 32 : index
    %236 = vector.load %arg6[%c0_65, %c32_66] : memref<64x64xf32, #tpu.memory_space<vmem>>, vector<8x32xf32>
    tpu.vector_store %arg6[%c0_65, %c32_66], %235 {strides = array<i32>} : memref<64x64xf32, #tpu.memory_space<vmem>>, vector<8x32xf32>,
    %c96 = arith.constant 96 : index
    %c0_67 = arith.constant 0 : index
    %237 = vector.load %arg2[%c96, %c0_67] : memref<192x256xbf16, #tpu.memory_space<vmem>>, vector<64x128xbf16>
    %c1 = arith.constant 1 : index
    %c0_68 = arith.constant 0 : index
    %238 = vector.load %arg3[%c1, %c0_68] : memref<3x256xf32, #tpu.memory_space<vmem>>, vector<1x128xf32>
    %c0_69 = arith.constant 0 : index
    %c0_70 = arith.constant 0 : index
    %239 = vector.load %arg6[%c0_69, %c0_70] : memref<64x64xf32, #tpu.memory_space<vmem>>, vector<64x64xf32>
    %240 = arith.truncf %239 : vector<64x64xf32> to vector<64x64xbf16>
    %cst_71 = arith.constant dense<0.000000e+00> : vector<64x128xf32>
    %241 = tpu.matmul %240, %237, %cst_71 {dimension_numbers = #tpu.dot_dimension_numbers<[1], [0], [0], [1], [0, 0, 1, 1], [], []>} : vector<64x64xbf16>, vector<64x128xbf16>, vector<64x128xf32> -> vector<64x128xf32>
    %242 = vector.broadcast %238 : vector<1x128xf32> to vector<64x128xf32>
    %243 = arith.addf %241, %242 : vector<64x128xf32>
    %244 = vector.extract_strided_slice %243 {offsets = [56, 0], sizes = [8, 128], strides = [1, 1]} : vector<64x128xf32> to vector<8x128xf32>
    %245 = vector.extract_strided_slice %244 {offsets = [0, 0], sizes = [8, 96], strides = [1, 1]} : vector<8x128xf32> to vector<8x96xf32>
    %246 = arith.negf %245 : vector<8x96xf32>
    %247 = math.exp %246 : vector<8x96xf32>
    %cst_72 = arith.constant 1.000000e+00 : f32
    %248 = vector.broadcast %cst_72 : f32 to vector<8x96xf32>
    %249 = arith.addf %248, %247 : vector<8x96xf32>
    %250 = arith.divf %248, %249 : vector<8x96xf32>
    %251 = vector.extract_strided_slice %244 {offsets = [0, 96], sizes = [8, 32], strides = [1, 1]} : vector<8x128xf32> to vector<8x32xf32>
    %252 = math.tanh %251 : vector<8x32xf32>
    %253 = vector.extract_strided_slice %250 {offsets = [0, 0], sizes = [8, 32], strides = [1, 1]} : vector<8x96xf32> to vector<8x32xf32>
    %254 = arith.mulf %253, %252 : vector<8x32xf32>
    %255 = vector.extract_strided_slice %250 {offsets = [0, 64], sizes = [8, 32], strides = [1, 1]} : vector<8x96xf32> to vector<8x32xf32>
    %256 = math.tanh %254 : vector<8x32xf32>
    %257 = arith.mulf %255, %256 : vector<8x32xf32>
    %258 = vector.extract_strided_slice %243 {offsets = [48, 0], sizes = [8, 128], strides = [1, 1]} : vector<64x128xf32> to vector<8x128xf32>
    %259 = arith.truncf %257 : vector<8x32xf32> to vector<8x32xbf16>
    %cst_73 = arith.constant dense<0.000000e+00> : vector<8x128xf32>
    %260 = tpu.matmul %259, %1, %cst_73 {dimension_numbers = #tpu.dot_dimension_numbers<[1], [0], [0], [1], [0, 0, 1, 1], [], []>} : vector<8x32xbf16>, vector<32x128xbf16>, vector<8x128xf32> -> vector<8x128xf32>
    %261 = arith.addf %258, %260 : vector<8x128xf32>
    %262 = vector.extract_strided_slice %261 {offsets = [0, 0], sizes = [8, 96], strides = [1, 1]} : vector<8x128xf32> to vector<8x96xf32>
    %263 = arith.negf %262 : vector<8x96xf32>
    %264 = math.exp %263 : vector<8x96xf32>
    %cst_74 = arith.constant 1.000000e+00 : f32
    %265 = vector.broadcast %cst_74 : f32 to vector<8x96xf32>
    %266 = arith.addf %265, %264 : vector<8x96xf32>
    %267 = arith.divf %265, %266 : vector<8x96xf32>
    %268 = vector.extract_strided_slice %261 {offsets = [0, 96], sizes = [8, 32], strides = [1, 1]} : vector<8x128xf32> to vector<8x32xf32>
    %269 = math.tanh %268 : vector<8x32xf32>
    %270 = vector.extract_strided_slice %267 {offsets = [0, 32], sizes = [8, 32], strides = [1, 1]} : vector<8x96xf32> to vector<8x32xf32>
    %271 = arith.mulf %270, %254 : vector<8x32xf32>
    %272 = vector.extract_strided_slice %267 {offsets = [0, 0], sizes = [8, 32], strides = [1, 1]} : vector<8x96xf32> to vector<8x32xf32>
    %273 = arith.mulf %272, %269 : vector<8x32xf32>
    %274 = arith.addf %271, %273 : vector<8x32xf32>
    %275 = vector.extract_strided_slice %267 {offsets = [0, 64], sizes = [8, 32], strides = [1, 1]} : vector<8x96xf32> to vector<8x32xf32>
    %276 = math.tanh %274 : vector<8x32xf32>
    %277 = arith.mulf %275, %276 : vector<8x32xf32>
    %278 = vector.extract_strided_slice %243 {offsets = [40, 0], sizes = [8, 128], strides = [1, 1]} : vector<64x128xf32> to vector<8x128xf32>
    %279 = arith.truncf %277 : vector<8x32xf32> to vector<8x32xbf16>
    %cst_75 = arith.constant dense<0.000000e+00> : vector<8x128xf32>
    %280 = tpu.matmul %279, %1, %cst_75 {dimension_numbers = #tpu.dot_dimension_numbers<[1], [0], [0], [1], [0, 0, 1, 1], [], []>} : vector<8x32xbf16>, vector<32x128xbf16>, vector<8x128xf32> -> vector<8x128xf32>
    %281 = arith.addf %278, %280 : vector<8x128xf32>
    %282 = vector.extract_strided_slice %281 {offsets = [0, 0], sizes = [8, 96], strides = [1, 1]} : vector<8x128xf32> to vector<8x96xf32>
    %283 = arith.negf %282 : vector<8x96xf32>
    %284 = math.exp %283 : vector<8x96xf32>
    %cst_76 = arith.constant 1.000000e+00 : f32
    %285 = vector.broadcast %cst_76 : f32 to vector<8x96xf32>
    %286 = arith.addf %285, %284 : vector<8x96xf32>
    %287 = arith.divf %285, %286 : vector<8x96xf32>
    %288 = vector.extract_strided_slice %281 {offsets = [0, 96], sizes = [8, 32], strides = [1, 1]} : vector<8x128xf32> to vector<8x32xf32>
    %289 = math.tanh %288 : vector<8x32xf32>
    %290 = vector.extract_strided_slice %287 {offsets = [0, 32], sizes = [8, 32], strides = [1, 1]} : vector<8x96xf32> to vector<8x32xf32>
    %291 = arith.mulf %290, %274 : vector<8x32xf32>
    %292 = vector.extract_strided_slice %287 {offsets = [0, 0], sizes = [8, 32], strides = [1, 1]} : vector<8x96xf32> to vector<8x32xf32>
    %293 = arith.mulf %292, %289 : vector<8x32xf32>
    %294 = arith.addf %291, %293 : vector<8x32xf32>
    %295 = vector.extract_strided_slice %287 {offsets = [0, 64], sizes = [8, 32], strides = [1, 1]} : vector<8x96xf32> to vector<8x32xf32>
    %296 = math.tanh %294 : vector<8x32xf32>
    %297 = arith.mulf %295, %296 : vector<8x32xf32>
    %298 = vector.extract_strided_slice %243 {offsets = [32, 0], sizes = [8, 128], strides = [1, 1]} : vector<64x128xf32> to vector<8x128xf32>
    %299 = arith.truncf %297 : vector<8x32xf32> to vector<8x32xbf16>
    %cst_77 = arith.constant dense<0.000000e+00> : vector<8x128xf32>
    %300 = tpu.matmul %299, %1, %cst_77 {dimension_numbers = #tpu.dot_dimension_numbers<[1], [0], [0], [1], [0, 0, 1, 1], [], []>} : vector<8x32xbf16>, vector<32x128xbf16>, vector<8x128xf32> -> vector<8x128xf32>
    %301 = arith.addf %298, %300 : vector<8x128xf32>
    %302 = vector.extract_strided_slice %301 {offsets = [0, 0], sizes = [8, 96], strides = [1, 1]} : vector<8x128xf32> to vector<8x96xf32>
    %303 = arith.negf %302 : vector<8x96xf32>
    %304 = math.exp %303 : vector<8x96xf32>
    %cst_78 = arith.constant 1.000000e+00 : f32
    %305 = vector.broadcast %cst_78 : f32 to vector<8x96xf32>
    %306 = arith.addf %305, %304 : vector<8x96xf32>
    %307 = arith.divf %305, %306 : vector<8x96xf32>
    %308 = vector.extract_strided_slice %301 {offsets = [0, 96], sizes = [8, 32], strides = [1, 1]} : vector<8x128xf32> to vector<8x32xf32>
    %309 = math.tanh %308 : vector<8x32xf32>
    %310 = vector.extract_strided_slice %307 {offsets = [0, 32], sizes = [8, 32], strides = [1, 1]} : vector<8x96xf32> to vector<8x32xf32>
    %311 = arith.mulf %310, %294 : vector<8x32xf32>
    %312 = vector.extract_strided_slice %307 {offsets = [0, 0], sizes = [8, 32], strides = [1, 1]} : vector<8x96xf32> to vector<8x32xf32>
    %313 = arith.mulf %312, %309 : vector<8x32xf32>
    %314 = arith.addf %311, %313 : vector<8x32xf32>
    %315 = vector.extract_strided_slice %307 {offsets = [0, 64], sizes = [8, 32], strides = [1, 1]} : vector<8x96xf32> to vector<8x32xf32>
    %316 = math.tanh %314 : vector<8x32xf32>
    %317 = arith.mulf %315, %316 : vector<8x32xf32>
    %318 = vector.extract_strided_slice %243 {offsets = [24, 0], sizes = [8, 128], strides = [1, 1]} : vector<64x128xf32> to vector<8x128xf32>
    %319 = arith.truncf %317 : vector<8x32xf32> to vector<8x32xbf16>
    %cst_79 = arith.constant dense<0.000000e+00> : vector<8x128xf32>
    %320 = tpu.matmul %319, %1, %cst_79 {dimension_numbers = #tpu.dot_dimension_numbers<[1], [0], [0], [1], [0, 0, 1, 1], [], []>} : vector<8x32xbf16>, vector<32x128xbf16>, vector<8x128xf32> -> vector<8x128xf32>
    %321 = arith.addf %318, %320 : vector<8x128xf32>
    %322 = vector.extract_strided_slice %321 {offsets = [0, 0], sizes = [8, 96], strides = [1, 1]} : vector<8x128xf32> to vector<8x96xf32>
    %323 = arith.negf %322 : vector<8x96xf32>
    %324 = math.exp %323 : vector<8x96xf32>
    %cst_80 = arith.constant 1.000000e+00 : f32
    %325 = vector.broadcast %cst_80 : f32 to vector<8x96xf32>
    %326 = arith.addf %325, %324 : vector<8x96xf32>
    %327 = arith.divf %325, %326 : vector<8x96xf32>
    %328 = vector.extract_strided_slice %321 {offsets = [0, 96], sizes = [8, 32], strides = [1, 1]} : vector<8x128xf32> to vector<8x32xf32>
    %329 = math.tanh %328 : vector<8x32xf32>
    %330 = vector.extract_strided_slice %327 {offsets = [0, 32], sizes = [8, 32], strides = [1, 1]} : vector<8x96xf32> to vector<8x32xf32>
    %331 = arith.mulf %330, %314 : vector<8x32xf32>
    %332 = vector.extract_strided_slice %327 {offsets = [0, 0], sizes = [8, 32], strides = [1, 1]} : vector<8x96xf32> to vector<8x32xf32>
    %333 = arith.mulf %332, %329 : vector<8x32xf32>
    %334 = arith.addf %331, %333 : vector<8x32xf32>
    %335 = vector.extract_strided_slice %327 {offsets = [0, 64], sizes = [8, 32], strides = [1, 1]} : vector<8x96xf32> to vector<8x32xf32>
    %336 = math.tanh %334 : vector<8x32xf32>
    %337 = arith.mulf %335, %336 : vector<8x32xf32>
    %338 = vector.extract_strided_slice %243 {offsets = [16, 0], sizes = [8, 128], strides = [1, 1]} : vector<64x128xf32> to vector<8x128xf32>
    %339 = arith.truncf %337 : vector<8x32xf32> to vector<8x32xbf16>
    %cst_81 = arith.constant dense<0.000000e+00> : vector<8x128xf32>
    %340 = tpu.matmul %339, %1, %cst_81 {dimension_numbers = #tpu.dot_dimension_numbers<[1], [0], [0], [1], [0, 0, 1, 1], [], []>} : vector<8x32xbf16>, vector<32x128xbf16>, vector<8x128xf32> -> vector<8x128xf32>
    %341 = arith.addf %338, %340 : vector<8x128xf32>
    %342 = vector.extract_strided_slice %341 {offsets = [0, 0], sizes = [8, 96], strides = [1, 1]} : vector<8x128xf32> to vector<8x96xf32>
    %343 = arith.negf %342 : vector<8x96xf32>
    %344 = math.exp %343 : vector<8x96xf32>
    %cst_82 = arith.constant 1.000000e+00 : f32
    %345 = vector.broadcast %cst_82 : f32 to vector<8x96xf32>
    %346 = arith.addf %345, %344 : vector<8x96xf32>
    %347 = arith.divf %345, %346 : vector<8x96xf32>
    %348 = vector.extract_strided_slice %341 {offsets = [0, 96], sizes = [8, 32], strides = [1, 1]} : vector<8x128xf32> to vector<8x32xf32>
    %349 = math.tanh %348 : vector<8x32xf32>
    %350 = vector.extract_strided_slice %347 {offsets = [0, 32], sizes = [8, 32], strides = [1, 1]} : vector<8x96xf32> to vector<8x32xf32>
    %351 = arith.mulf %350, %334 : vector<8x32xf32>
    %352 = vector.extract_strided_slice %347 {offsets = [0, 0], sizes = [8, 32], strides = [1, 1]} : vector<8x96xf32> to vector<8x32xf32>
    %353 = arith.mulf %352, %349 : vector<8x32xf32>
    %354 = arith.addf %351, %353 : vector<8x32xf32>
    %355 = vector.extract_strided_slice %347 {offsets = [0, 64], sizes = [8, 32], strides = [1, 1]} : vector<8x96xf32> to vector<8x32xf32>
    %356 = math.tanh %354 : vector<8x32xf32>
    %357 = arith.mulf %355, %356 : vector<8x32xf32>
    %358 = vector.extract_strided_slice %243 {offsets = [8, 0], sizes = [8, 128], strides = [1, 1]} : vector<64x128xf32> to vector<8x128xf32>
    %359 = arith.truncf %357 : vector<8x32xf32> to vector<8x32xbf16>
    %cst_83 = arith.constant dense<0.000000e+00> : vector<8x128xf32>
    %360 = tpu.matmul %359, %1, %cst_83 {dimension_numbers = #tpu.dot_dimension_numbers<[1], [0], [0], [1], [0, 0, 1, 1], [], []>} : vector<8x32xbf16>, vector<32x128xbf16>, vector<8x128xf32> -> vector<8x128xf32>
    %361 = arith.addf %358, %360 : vector<8x128xf32>
    %362 = vector.extract_strided_slice %361 {offsets = [0, 0], sizes = [8, 96], strides = [1, 1]} : vector<8x128xf32> to vector<8x96xf32>
    %363 = arith.negf %362 : vector<8x96xf32>
    %364 = math.exp %363 : vector<8x96xf32>
    %cst_84 = arith.constant 1.000000e+00 : f32
    %365 = vector.broadcast %cst_84 : f32 to vector<8x96xf32>
    %366 = arith.addf %365, %364 : vector<8x96xf32>
    %367 = arith.divf %365, %366 : vector<8x96xf32>
    %368 = vector.extract_strided_slice %361 {offsets = [0, 96], sizes = [8, 32], strides = [1, 1]} : vector<8x128xf32> to vector<8x32xf32>
    %369 = math.tanh %368 : vector<8x32xf32>
    %370 = vector.extract_strided_slice %367 {offsets = [0, 32], sizes = [8, 32], strides = [1, 1]} : vector<8x96xf32> to vector<8x32xf32>
    %371 = arith.mulf %370, %354 : vector<8x32xf32>
    %372 = vector.extract_strided_slice %367 {offsets = [0, 0], sizes = [8, 32], strides = [1, 1]} : vector<8x96xf32> to vector<8x32xf32>
    %373 = arith.mulf %372, %369 : vector<8x32xf32>
    %374 = arith.addf %371, %373 : vector<8x32xf32>
    %375 = vector.extract_strided_slice %367 {offsets = [0, 64], sizes = [8, 32], strides = [1, 1]} : vector<8x96xf32> to vector<8x32xf32>
    %376 = math.tanh %374 : vector<8x32xf32>
    %377 = arith.mulf %375, %376 : vector<8x32xf32>
    %378 = vector.extract_strided_slice %243 {offsets = [0, 0], sizes = [8, 128], strides = [1, 1]} : vector<64x128xf32> to vector<8x128xf32>
    %379 = arith.truncf %377 : vector<8x32xf32> to vector<8x32xbf16>
    %cst_85 = arith.constant dense<0.000000e+00> : vector<8x128xf32>
    %380 = tpu.matmul %379, %1, %cst_85 {dimension_numbers = #tpu.dot_dimension_numbers<[1], [0], [0], [1], [0, 0, 1, 1], [], []>} : vector<8x32xbf16>, vector<32x128xbf16>, vector<8x128xf32> -> vector<8x128xf32>
    %381 = arith.addf %378, %380 : vector<8x128xf32>
    %382 = vector.extract_strided_slice %381 {offsets = [0, 0], sizes = [8, 96], strides = [1, 1]} : vector<8x128xf32> to vector<8x96xf32>
    %383 = arith.negf %382 : vector<8x96xf32>
    %384 = math.exp %383 : vector<8x96xf32>
    %cst_86 = arith.constant 1.000000e+00 : f32
    %385 = vector.broadcast %cst_86 : f32 to vector<8x96xf32>
    %386 = arith.addf %385, %384 : vector<8x96xf32>
    %387 = arith.divf %385, %386 : vector<8x96xf32>
    %388 = vector.extract_strided_slice %381 {offsets = [0, 96], sizes = [8, 32], strides = [1, 1]} : vector<8x128xf32> to vector<8x32xf32>
    %389 = math.tanh %388 : vector<8x32xf32>
    %390 = vector.extract_strided_slice %387 {offsets = [0, 32], sizes = [8, 32], strides = [1, 1]} : vector<8x96xf32> to vector<8x32xf32>
    %391 = arith.mulf %390, %374 : vector<8x32xf32>
    %392 = vector.extract_strided_slice %387 {offsets = [0, 0], sizes = [8, 32], strides = [1, 1]} : vector<8x96xf32> to vector<8x32xf32>
    %393 = arith.mulf %392, %389 : vector<8x32xf32>
    %394 = arith.addf %391, %393 : vector<8x32xf32>
    %395 = vector.extract_strided_slice %387 {offsets = [0, 64], sizes = [8, 32], strides = [1, 1]} : vector<8x96xf32> to vector<8x32xf32>
    %396 = math.tanh %394 : vector<8x32xf32>
    %397 = arith.mulf %395, %396 : vector<8x32xf32>
    %c2 = arith.constant 2 : index
    %c0_87 = arith.constant 0 : index
    %398 = vector.load %arg3[%c2, %c0_87] : memref<3x256xf32, #tpu.memory_space<vmem>>, vector<1x32xf32>
    %c2_88 = arith.constant 2 : index
    %c32_89 = arith.constant 32 : index
    %399 = vector.load %arg3[%c2_88, %c32_89] : memref<3x256xf32, #tpu.memory_space<vmem>>, vector<1x1xf32>
    %400 = vector.broadcast %398 : vector<1x32xf32> to vector<8x32xf32>
    %401 = arith.mulf %397, %400 : vector<8x32xf32>
    %cst_90 = arith.constant dense<0.000000e+00> : vector<8xf32>
    %402 = vector.multi_reduction <add>, %401, %cst_90 [1] : vector<8x32xf32> to vector<8xf32>
    %403 = vector.shape_cast %402 : vector<8xf32> to vector<8x1xf32>
    %404 = vector.broadcast %399 : vector<1x1xf32> to vector<8x1xf32>
    %405 = arith.addf %403, %404 : vector<8x1xf32>
    %c0_91 = arith.constant 0 : index
    %c0_92 = arith.constant 0 : index
    %406 = vector.load %arg4[%c0_91, %c0_92] : memref<8x1xf32, #tpu.memory_space<vmem>>, vector<8x1xf32>
    tpu.vector_store %arg4[%c0_91, %c0_92], %405 {strides = array<i32>} : memref<8x1xf32, #tpu.memory_space<vmem>>, vector<8x1xf32>,
    return
  }
  func.func @transform_0(%arg0: i32) -> (i32, i32, i32) {
    %c0_i32 = arith.constant 0 : i32
    %c0_i32_0 = arith.constant 0 : i32
    %c0_i32_1 = arith.constant 0 : i32
    %c0_i32_2 = arith.constant 0 : i32
    return %c0_i32, %c0_i32_0, %c0_i32_1 : i32, i32, i32
  }
  func.func @transform_1(%arg0: i32) -> (i32, i32) {
    %c0_i32 = arith.constant 0 : i32
    %c0_i32_0 = arith.constant 0 : i32
    %c0_i32_1 = arith.constant 0 : i32
    return %c0_i32, %c0_i32_0 : i32, i32
  }
  func.func @transform_2(%arg0: i32) -> (i32, i32) {
    %c0_i32 = arith.constant 0 : i32
    %c0_i32_0 = arith.constant 0 : i32
    %c0_i32_1 = arith.constant 0 : i32
    return %c0_i32, %c0_i32_0 : i32, i32
  }
  func.func @transform_3(%arg0: i32) -> (i32, i32) {
    %c0_i32 = arith.constant 0 : i32
    %c0_i32_0 = arith.constant 0 : i32
    %c0_i32_1 = arith.constant 0 : i32
    return %c0_i32, %c0_i32_0 : i32, i32
  }
}

</mosaic_0001>

<llo_original>
// kernel: lstm_model_forward.1
$region0: #{lstm_model_forward.1}
  #allocation0 [shape = 'u32[]', space=smem, size = 0x4, offset = 0x4, fixed_abs, tag = 'smem constant byte address 0x4 - core index']
  #allocation1 [shape = 'u32[144,128]{1,0:T(1,128)}', space=vmem, size = 0x12000, scoped, tag = 'internal scratch']
  #allocation2 [shape = 'f32[64,256]{1,0:T(8,128)}', space=vmem, size = 0x10000, scoped, tag = 'scratch operand']
  #allocation3 [shape = 'f32[64,64]{1,0:T(8,128)}', space=vmem, size = 0x8000, scoped, tag = 'scratch operand']
  %s0 = inlined_call_operand.hbm [shape: f32[8,8,16], index: 0, kind: input, shape index: {}]
  %s1 = inlined_call_operand.hbm [shape: bf16[192,256], index: 1, kind: input, shape index: {}]
  %s2 = inlined_call_operand.hbm [shape: f32[3,256], index: 2, kind: input, shape index: {}]
  %s3 = inlined_call_operand.vmem [shape: f32[8,1], index: 3, kind: output, shape index: {}]
  %s4 = sld [smem:[#allocation0]]
  $region34: #{lstm_model_forward.1} parent=0
    _
  %s6 = ssub.s32 1, %s4
  %s7 = scalar_select 0, %s6, %s4
  $region1: #{lstm_model_forward.1} parent=0
    #allocation4 [shape = 'u8[32768]{0}', space=vmem, size = 0x8000, scoped, tag = 'input window, operand 0, single buffered']
    #allocation5 [shape = 's32[1]{0}', space=sflag, size = 0x4, scoped, tag = 'scoped memory for lstm_model_forward.1']
    #allocation6 [shape = 'u8[98304]{0}', space=vmem, size = 0x18000, scoped, tag = 'input window, operand 1, single buffered']
    #allocation7 [shape = 's32[1]{0}', space=sflag, size = 0x4, scoped, tag = 'scoped memory for lstm_model_forward.1']
    #allocation8 [shape = 'u8[4096]{0}', space=vmem, size = 0x1000, scoped, tag = 'input window, operand 2, single buffered']
    %8 = vsyncpa [#allocation5], 0
    %9 = vsyncpa [#allocation7], 0
    // Predicated region
    $region2: #{lstm_model_forward.1} parent=1 // pred_check
      _
    $region3: #{lstm_model_forward.1} parent=1 // pred_check_branch
      %11 = sbr.rel (0) target = $region5
    $region4: #{lstm_model_forward.1} parent=1 // pred_region
      %s13 = ssub.s32 1024, 1024
      %14 = vsyncadd [#allocation5], %s13
      %s15 = sshll.u32 [#allocation4], 4
      %s16 = int_to_ptr.vmem [resolvable:$true] %s15
      %21 = dma.hbm_to_vmem [thread:$0]  %s0, 1024, %s16, [#allocation5], 128, 128, 8
    $region5: #{lstm_model_forward.1} parent=1 // pred_fallthru
      _
    // Predicated region
    $region6: #{lstm_model_forward.1} parent=1 // pred_check
      _
    $region7: #{lstm_model_forward.1} parent=1 // pred_check_branch
      %23 = sbr.rel (0) target = $region9
    $region8: #{lstm_model_forward.1} parent=1 // pred_region
      %s25 = ssub.s32 3072, 3072
      %26 = vsyncadd [#allocation7], %s25
      %s27 = sshll.u32 [#allocation6], 4
      %s28 = int_to_ptr.vmem [resolvable:$true] %s27
      %33 = dma.hbm_to_vmem [thread:$0]  %s1, 3072, %s28, [#allocation7], 128, 128, 8
    $region9: #{lstm_model_forward.1} parent=1 // pred_fallthru
      _
    // Predicated region
    $region10: #{lstm_model_forward.1} parent=1 // pred_check
      _
    $region11: #{lstm_model_forward.1} parent=1 // pred_check_branch
      %35 = sbr.rel (0) target = $region13
    $region12: #{lstm_model_forward.1} parent=1 // pred_region
      %s37 = ssub.s32 128, 128
      %38 = vsyncadd [#allocation7], %s37
      %s40 = sshll.u32 [#allocation8], 4
      %s41 = int_to_ptr.vmem [resolvable:$true] %s40
      %43 = dma.hbm_to_vmem [thread:$0]  %s2, 128, %s41, [#allocation7]
    $region13: #{lstm_model_forward.1} parent=1 // pred_fallthru
      _
    // Predicated region
    $region14: #{lstm_model_forward.1} parent=1 // pred_check
      _
    $region15: #{lstm_model_forward.1} parent=1 // pred_check_branch
      %45 = sbr.rel (0) target = $region17
    $region16: #{lstm_model_forward.1} parent=1 // pred_region
      %46 = dma.done [#allocation5], 1024
    $region17: #{lstm_model_forward.1} parent=1 // pred_fallthru
      _
    // Predicated region
    $region18: #{lstm_model_forward.1} parent=1 // pred_check
      _
    $region19: #{lstm_model_forward.1} parent=1 // pred_check_branch
      %48 = sbr.rel (0) target = $region21
    $region20: #{lstm_model_forward.1} parent=1 // pred_region
      %49 = dma.done [#allocation7], 3072
    $region21: #{lstm_model_forward.1} parent=1 // pred_fallthru
      _
    // Predicated region
    $region22: #{lstm_model_forward.1} parent=1 // pred_check
      _
    $region23: #{lstm_model_forward.1} parent=1 // pred_check_branch
      %51 = sbr.rel (0) target = $region25
    $region24: #{lstm_model_forward.1} parent=1 // pred_region
      %52 = dma.done [#allocation7], 128
    $region25: #{lstm_model_forward.1} parent=1 // pred_fallthru
      _
    %v54 = vld [vmem:[#allocation6 + $0x20] sm:$0xff]
    %v55 = vld [vmem:[#allocation6 + $0x28] sm:$0xff]
    %v56 = vld [vmem:[#allocation6 + $0x30] sm:$0xff]
    %v57 = vld [vmem:[#allocation6 + $0x38] sm:$0xff]
    %v58 = vld [vmem:[#allocation6 + $0x40] sm:$0xff]
    %v59 = vld [vmem:[#allocation6 + $0x48] sm:$0xff]
    %v60 = vld [vmem:[#allocation6 + $0x50] sm:$0xff]
    %v61 = vld [vmem:[#allocation6 + $0x58] sm:$0xff]
    %v62 = vld [vmem:[#allocation6 + $0xa0] sm:$0xf]
    %v63 = vld [vmem:[#allocation6 + $0xa8] sm:$0xf]
    %v64 = vld [vmem:[#allocation6 + $0xb0] sm:$0xf]
    %v65 = vld [vmem:[#allocation6 + $0xb8] sm:$0xf]
    %v66 = vld [vmem:[#allocation4] sm:$0xff]
    %v67 = vld [vmem:[#allocation4 + $0x8] sm:$0xff]
    %v68 = vld [vmem:[#allocation4 + $0x10] sm:$0xff]
    %v69 = vld [vmem:[#allocation4 + $0x18] sm:$0xff]
    %v70 = vld [vmem:[#allocation4 + $0x20] sm:$0xff]
    %v71 = vld [vmem:[#allocation4 + $0x28] sm:$0xff]
    %v72 = vld [vmem:[#allocation4 + $0x30] sm:$0xff]
    %v73 = vld [vmem:[#allocation4 + $0x38] sm:$0xff]
    %75 = vrot.lane.b32.xlu0 %v73, 16
    %v76 = vpop.permute.xlu0 %75
    %vm78 = vcmask 130048
    %v79 = vsel %vm78, %v66, %v76
    %81 = vrot.lane.b32.xlu0 %v72, 16
    %v82 = vpop.permute.xlu0 %81
    %v84 = vsel %vm78, %v67, %v82
    %86 = vrot.lane.b32.xlu0 %v71, 16
    %v87 = vpop.permute.xlu0 %86
    %v89 = vsel %vm78, %v68, %v87
    %91 = vrot.lane.b32.xlu0 %v70, 16
    %v92 = vpop.permute.xlu0 %91
    %v94 = vsel %vm78, %v69, %v92
    %96 = vrot.lane.b32.xlu0 %v69, 16
    %v97 = vpop.permute.xlu0 %96
    %v99 = vsel %vm78, %v70, %v97
    %101 = vrot.lane.b32.xlu0 %v68, 16
    %v102 = vpop.permute.xlu0 %101
    %v104 = vsel %vm78, %v71, %v102
    %106 = vrot.lane.b32.xlu0 %v67, 16
    %v107 = vpop.permute.xlu0 %106
    %v109 = vsel %vm78, %v72, %v107
    %111 = vrot.lane.b32.xlu0 %v66, 16
    %v112 = vpop.permute.xlu0 %111
    %v114 = vsel %vm78, %v73, %v112
    %v115 = vpack.c.bf16 %v84, %v79
    %v116 = vpack.c.bf16 %v94, %v89
    %v117 = vpack.c.bf16 %v104, %v99
    %v118 = vpack.c.bf16 %v114, %v109
    %v119 = vld [vmem:[#allocation6] sm:$0xff]
    %v120 = vld [vmem:[#allocation6 + $0x8] sm:$0xff]
    %v121 = vld [vmem:[#allocation6 + $0x10] sm:$0xff]
    %v122 = vld [vmem:[#allocation6 + $0x18] sm:$0xff]
    %v123 = vld [vmem:[#allocation8] ss:$4 sm:$0x3]
    %v125 = vlaneseq
    %v126 = vshrl.u32 %v125, 7
    %v127 = vsub.s32 0, %v126
    %v128 = vrot.slane %v123, %v127
    %v129 = vlaneseq
    %v130 = vshrl.u32 %v129, 7
    %v131 = vsub.s32 1, %v130
    %v132 = vrot.slane %v123, %v131
    %v139 = vunpack.c.l.b16 %v119
    %v140 = vunpack.c.h.b16 %v119
    %v141 = vunpack.c.l.b16 %v120
    %v142 = vunpack.c.h.b16 %v120
    %v143 = vunpack.c.l.b16 %v121
    %v144 = vunpack.c.h.b16 %v121
    %v145 = vunpack.c.l.b16 %v122
    %v146 = vunpack.c.h.b16 %v122
    %v147 = vpack.c.b16 %v141, %v139
    %v148 = vpack.c.b16 %v142, %v140
    %v149 = vpack.c.b16 %v145, %v143
    %v150 = vpack.c.b16 %v146, %v144
    %vm155 = vcmask 261120
    %v157 = vsel %vm155, %v115, 0
    %v160 = vsel %vm155, %v116, 0
    %v163 = vsel %vm155, %v117, 0
    %v166 = vsel %vm155, %v118, 0
    %168 = vmatprep.subr.bf16.mxu0 0
    %169 = vmatpush1.bf16.msra.mxu0 0
    %170 = vmatprep.subr.bf16.mxu0 0
    %171 = vmatpush1.bf16.msra.mxu0 0
    %172 = vmatprep.subr.bf16.mxu0 0
    %173 = vmatpush1.bf16.msra.mxu0 0
    %174 = vmatprep.subr.bf16.mxu0 0
    %175 = vmatpush1.bf16.msra.mxu0 0
    %176 = vmatprep.subr.bf16.mxu0 0
    %177 = vmatpush1.bf16.msra.mxu0 0
    %178 = vmatprep.subr.bf16.mxu0 0
    %179 = vmatpush1.bf16.msra.mxu0 0
    %180 = vmatprep.subr.bf16.mxu0 %v150
    %181 = vmatpush1.bf16.msra.mxu0 %v149
    %182 = vmatprep.subr.bf16.mxu0 %v148
    %183 = vmatpush1.bf16.msra.mxu0 %v147
    %184 = vmatprep.subr.bf16.mxu0 0
    %185 = vmatpush2.bf16.msra.mxu0 0
    %186 = vmatprep.subr.bf16.mxu0 0
    %187 = vmatpush2.bf16.msra.mxu0 0
    %188 = vmatprep.subr.bf16.mxu0 0
    %189 = vmatpush2.bf16.msra.mxu0 0
    %190 = vmatprep.subr.bf16.mxu0 0
    %191 = vmatpush2.bf16.msra.mxu0 0
    %192 = vmatprep.subr.bf16.mxu0 0
    %193 = vmatpush2.bf16.msra.mxu0 0
    %194 = vmatprep.subr.bf16.mxu0 0
    %195 = vmatpush2.bf16.msra.mxu0 0
    %196 = vmatprep.subr.bf16.mxu0 0
    %197 = vmatpush2.bf16.msra.mxu0 0
    %198 = vmatprep.subr.bf16.mxu0 0
    %199 = vmatpush2.bf16.msra.mxu0 0
    %200 = vmatprep.mubr.bf16.mxu0 0
    %201 = vmatmul.mubr.bf16.gmra.mxu0 %v157
    %v202 = vpop.f32.mrf.mxu0
    %v203 = vadd.f32 %v128, %v202
    %v204 = vpop.f32.mrf.mxu0
    %v205 = vadd.f32 %v132, %v204
    %v206 = vpop.f32.mrf.mxu0
    %v207 = vadd.f32 %v128, %v206
    %v208 = vpop.f32.mrf.mxu0
    %v209 = vadd.f32 %v132, %v208
    %210 = vmatprep.mubr.bf16.mxu0 0
    %211 = vmatmul.mubr.bf16.gmra.mxu0 %v160
    %v212 = vpop.f32.mrf.mxu0
    %v213 = vadd.f32 %v128, %v212
    %v214 = vpop.f32.mrf.mxu0
    %v215 = vadd.f32 %v132, %v214
    %v216 = vpop.f32.mrf.mxu0
    %v217 = vadd.f32 %v128, %v216
    %v218 = vpop.f32.mrf.mxu0
    %v219 = vadd.f32 %v132, %v218
    %220 = vmatprep.mubr.bf16.mxu0 0
    %221 = vmatmul.mubr.bf16.gmra.mxu0 %v163
    %v222 = vpop.f32.mrf.mxu0
    %v223 = vadd.f32 %v128, %v222
    %v224 = vpop.f32.mrf.mxu0
    %v225 = vadd.f32 %v132, %v224
    %v226 = vpop.f32.mrf.mxu0
    %v227 = vadd.f32 %v128, %v226
    %v228 = vpop.f32.mrf.mxu0
    %v229 = vadd.f32 %v132, %v228
    %230 = vmatprep.mubr.bf16.mxu0 0
    %231 = vmatmul.mubr.bf16.gmra.mxu0 %v166
    %v232 = vpop.f32.mrf.mxu0
    %v233 = vadd.f32 %v128, %v232
    %v234 = vpop.f32.mrf.mxu0
    %v235 = vadd.f32 %v132, %v234
    %v236 = vpop.f32.mrf.mxu0
    %v237 = vadd.f32 %v128, %v236
    %v238 = vpop.f32.mrf.mxu0
    %v239 = vadd.f32 %v132, %v238
    %240 = vdwg.mxu0
    %241 = vst [vmem:[#allocation2] sm:$0xff] %v203
    %242 = vst [vmem:[#allocation2 + $0x8] sm:$0xff] %v205
    %243 = vst [vmem:[#allocation2 + $0x10] sm:$0xff] %v207
    %244 = vst [vmem:[#allocation2 + $0x18] sm:$0xff] %v209
    %245 = vst [vmem:[#allocation2 + $0x20] sm:$0xff] %v213
    %246 = vst [vmem:[#allocation2 + $0x28] sm:$0xff] %v215
    %247 = vst [vmem:[#allocation2 + $0x30] sm:$0xff] %v217
    %248 = vst [vmem:[#allocation2 + $0x38] sm:$0xff] %v219
    %249 = vst [vmem:[#allocation2 + $0x40] sm:$0xff] %v223
    %250 = vst [vmem:[#allocation2 + $0x48] sm:$0xff] %v225
    %251 = vst [vmem:[#allocation2 + $0x50] sm:$0xff] %v227
    %252 = vst [vmem:[#allocation2 + $0x58] sm:$0xff] %v229
    %253 = vst [vmem:[#allocation2 + $0x60] sm:$0xff] %v233
    %254 = vst [vmem:[#allocation2 + $0x68] sm:$0xff] %v235
    %255 = vst [vmem:[#allocation2 + $0x70] sm:$0xff] %v237
    %256 = vst [vmem:[#allocation2 + $0x78] sm:$0xff] %v239
    %v257 = vld [vmem:[#allocation2] sm:$0xff]
    %v258 = vld [vmem:[#allocation2 + $0x8] sm:$0xff]
    %v259 = vxor.u32 %v257, 2147483648
    %v260 = vxor.u32 %v258, 2147483648
    %v261 = vmul.f32 %v259, 1.442695
    %v262 = vpow.pop %v261
    %v263 = vmul.f32 %v260, 1.442695
    %v264 = vpow.pop %v263
    %v265 = vadd.f32 %v262, 1.0
    %v266 = vadd.f32 %v264, 1.0
    %v267 = vrcp.pop %v265
    %v268 = vmul.f32 1.0, %v267
    %v269 = vrcp.pop %v266
    %v270 = vmul.f32 1.0, %v269
    %v271 = vtanh.pop %v258
    %273 = vrot.lane.b32.xlu0 %v271, 64
    %v274 = vpop.permute.xlu0 %273
    %v276 = vmul.f32 %v268, %v274
    %v277 = vtanh.pop %v276
    %v278 = vmul.f32 %v270, %v277
    %279 = vst.msk [vmem:[#allocation3] sm:$0xff] %vm155, %v278
    %vm280 = vcmask 523520
    %281 = vst.msk [vmem:[#allocation3 + $0x38] sm:$0xff] %vm280, %v278
    %v282 = vld [vmem:[#allocation2 + $0x10] sm:$0xff]
    %v283 = vld [vmem:[#allocation2 + $0x18] sm:$0xff]
    %v284 = vpack.c.bf16 %v278, %v278
    %v293 = vunpack.c.l.b16 %v54
    %v294 = vunpack.c.h.b16 %v54
    %v295 = vunpack.c.l.b16 %v55
    %v296 = vunpack.c.h.b16 %v55
    %v297 = vunpack.c.l.b16 %v56
    %v298 = vunpack.c.h.b16 %v56
    %v299 = vunpack.c.l.b16 %v57
    %v300 = vunpack.c.h.b16 %v57
    %v301 = vunpack.c.l.b16 %v58
    %v302 = vunpack.c.h.b16 %v58
    %v303 = vunpack.c.l.b16 %v59
    %v304 = vunpack.c.h.b16 %v59
    %v305 = vunpack.c.l.b16 %v60
    %v306 = vunpack.c.h.b16 %v60
    %v307 = vunpack.c.l.b16 %v61
    %v308 = vunpack.c.h.b16 %v61
    %v309 = vpack.c.b16 %v295, %v293
    %v310 = vpack.c.b16 %v296, %v294
    %v311 = vpack.c.b16 %v299, %v297
    %v312 = vpack.c.b16 %v300, %v298
    %v313 = vpack.c.b16 %v303, %v301
    %v314 = vpack.c.b16 %v304, %v302
    %v315 = vpack.c.b16 %v307, %v305
    %v316 = vpack.c.b16 %v308, %v306
    %vm325 = vcmask 523264
    %v327 = vsel %vm325, %v284, 0
    %329 = vmatprep.subr.bf16.mxu0 0
    %330 = vmatpush1.bf16.msra.mxu0 0
    %331 = vmatprep.subr.bf16.mxu0 0
    %332 = vmatpush1.bf16.msra.mxu0 0
    %333 = vmatprep.subr.bf16.mxu0 0
    %334 = vmatpush1.bf16.msra.mxu0 0
    %335 = vmatprep.subr.bf16.mxu0 0
    %336 = vmatpush1.bf16.msra.mxu0 0
    %337 = vmatprep.subr.bf16.mxu0 %v316
    %338 = vmatpush1.bf16.msra.mxu0 %v315
    %339 = vmatprep.subr.bf16.mxu0 %v314
    %340 = vmatpush1.bf16.msra.mxu0 %v313
    %341 = vmatprep.subr.bf16.mxu0 %v312
    %342 = vmatpush1.bf16.msra.mxu0 %v311
    %343 = vmatprep.subr.bf16.mxu0 %v310
    %344 = vmatpush1.bf16.msra.mxu0 %v309
    %345 = vmatprep.subr.bf16.mxu0 0
    %346 = vmatpush2.bf16.msra.mxu0 0
    %347 = vmatprep.subr.bf16.mxu0 0
    %348 = vmatpush2.bf16.msra.mxu0 0
    %349 = vmatprep.subr.bf16.mxu0 0
    %350 = vmatpush2.bf16.msra.mxu0 0
    %351 = vmatprep.subr.bf16.mxu0 0
    %352 = vmatpush2.bf16.msra.mxu0 0
    %353 = vmatprep.subr.bf16.mxu0 0
    %354 = vmatpush2.bf16.msra.mxu0 0
    %355 = vmatprep.subr.bf16.mxu0 0
    %356 = vmatpush2.bf16.msra.mxu0 0
    %357 = vmatprep.subr.bf16.mxu0 0
    %358 = vmatpush2.bf16.msra.mxu0 0
    %359 = vmatprep.subr.bf16.mxu0 0
    %360 = vmatpush2.bf16.msra.mxu0 0
    %361 = vmatprep.mubr.bf16.mxu0 0
    %362 = vmatmul.mubr.bf16.gmra.mxu0 %v327
    %v363 = vpop.f32.mrf.mxu0
    %v364 = vadd.f32 0.0, %v363
    %v365 = vpop.f32.mrf.mxu0
    %v366 = vadd.f32 0.0, %v365
    %v367 = vpop.f32.mrf.mxu0
    %v368 = vpop.f32.mrf.mxu0
    %369 = vdwg.mxu0
    %v370 = vadd.f32 %v282, %v364
    %v371 = vadd.f32 %v283, %v366
    %v372 = vxor.u32 %v370, 2147483648
    %v373 = vxor.u32 %v371, 2147483648
    %v374 = vmul.f32 %v372, 1.442695
    %v375 = vpow.pop %v374
    %v376 = vmul.f32 %v373, 1.442695
    %v377 = vpow.pop %v376
    %v378 = vadd.f32 %v375, 1.0
    %v379 = vadd.f32 %v377, 1.0
    %v380 = vrcp.pop %v378
    %v381 = vmul.f32 1.0, %v380
    %v382 = vrcp.pop %v379
    %v383 = vmul.f32 1.0, %v382
    %v384 = vtanh.pop %v371
    %386 = vrot.lane.b32.xlu0 %v276, 64
    %v387 = vpop.permute.xlu0 %386
    %v389 = vmul.f32 %v381, %v387
    %391 = vrot.lane.b32.xlu0 %v384, 64
    %v392 = vpop.permute.xlu0 %391
    %v394 = vmul.f32 %v381, %v392
    %396 = vrot.lane.b32.xlu0 %v394, 64
    %v397 = vpop.permute.xlu0 %396
    %v399 = vadd.f32 %v389, %v397
    %v400 = vtanh.pop %v399
    %402 = vrot.lane.b32.xlu0 %v400, 64
    %v403 = vpop.permute.xlu0 %402
    %v405 = vmul.f32 %v383, %v403
    %406 = vst.msk [vmem:[#allocation3 + $0x8] sm:$0xff] %vm155, %v405
    %407 = vst.msk [vmem:[#allocation3 + $0x30] sm:$0xff] %vm280, %v405
    %v408 = vld [vmem:[#allocation2 + $0x20] sm:$0xff]
    %v409 = vld [vmem:[#allocation2 + $0x28] sm:$0xff]
    %v410 = vpack.c.bf16 %v405, %v405
    %v412 = vsel %vm325, %v410, 0
    %414 = vmatprep.subr.bf16.mxu0 0
    %415 = vmatpush1.bf16.msra.mxu0 0
    %416 = vmatprep.subr.bf16.mxu0 0
    %417 = vmatpush1.bf16.msra.mxu0 0
    %418 = vmatprep.subr.bf16.mxu0 0
    %419 = vmatpush1.bf16.msra.mxu0 0
    %420 = vmatprep.subr.bf16.mxu0 0
    %421 = vmatpush1.bf16.msra.mxu0 0
    %422 = vmatprep.subr.bf16.mxu0 %v316
    %423 = vmatpush1.bf16.msra.mxu0 %v315
    %424 = vmatprep.subr.bf16.mxu0 %v314
    %425 = vmatpush1.bf16.msra.mxu0 %v313
    %426 = vmatprep.subr.bf16.mxu0 %v312
    %427 = vmatpush1.bf16.msra.mxu0 %v311
    %428 = vmatprep.subr.bf16.mxu0 %v310
    %429 = vmatpush1.bf16.msra.mxu0 %v309
    %430 = vmatprep.subr.bf16.mxu0 0
    %431 = vmatpush2.bf16.msra.mxu0 0
    %432 = vmatprep.subr.bf16.mxu0 0
    %433 = vmatpush2.bf16.msra.mxu0 0
    %434 = vmatprep.subr.bf16.mxu0 0
    %435 = vmatpush2.bf16.msra.mxu0 0
    %436 = vmatprep.subr.bf16.mxu0 0
    %437 = vmatpush2.bf16.msra.mxu0 0
    %438 = vmatprep.subr.bf16.mxu0 0
    %439 = vmatpush2.bf16.msra.mxu0 0
    %440 = vmatprep.subr.bf16.mxu0 0
    %441 = vmatpush2.bf16.msra.mxu0 0
    %442 = vmatprep.subr.bf16.mxu0 0
    %443 = vmatpush2.bf16.msra.mxu0 0
    %444 = vmatprep.subr.bf16.mxu0 0
    %445 = vmatpush2.bf16.msra.mxu0 0
    %446 = vmatprep.mubr.bf16.mxu0 0
    %447 = vmatmul.mubr.bf16.gmra.mxu0 %v412
    %v448 = vpop.f32.mrf.mxu0
    %v449 = vadd.f32 0.0, %v448
    %v450 = vpop.f32.mrf.mxu0
    %v451 = vadd.f32 0.0, %v450
    %v452 = vpop.f32.mrf.mxu0
    %v453 = vpop.f32.mrf.mxu0
    %454 = vdwg.mxu0
    %v455 = vadd.f32 %v408, %v449
    %v456 = vadd.f32 %v409, %v451
    %v457 = vxor.u32 %v455, 2147483648
    %v458 = vxor.u32 %v456, 2147483648
    %v459 = vmul.f32 %v457, 1.442695
    %v460 = vpow.pop %v459
    %v461 = vmul.f32 %v458, 1.442695
    %v462 = vpow.pop %v461
    %v463 = vadd.f32 %v460, 1.0
    %v464 = vadd.f32 %v462, 1.0
    %v465 = vrcp.pop %v463
    %v466 = vmul.f32 1.0, %v465
    %v467 = vrcp.pop %v464
    %v468 = vmul.f32 1.0, %v467
    %v469 = vtanh.pop %v456
    %v470 = vmul.f32 %v466, %v399
    %472 = vrot.lane.b32.xlu0 %v469, 64
    %v473 = vpop.permute.xlu0 %472
    %v475 = vmul.f32 %v466, %v473
    %477 = vrot.lane.b32.xlu0 %v475, 64
    %v478 = vpop.permute.xlu0 %477
    %v480 = vadd.f32 %v470, %v478
    %v481 = vtanh.pop %v480
    %483 = vrot.lane.b32.xlu0 %v481, 64
    %v484 = vpop.permute.xlu0 %483
    %v486 = vmul.f32 %v468, %v484
    %487 = vst.msk [vmem:[#allocation3 + $0x10] sm:$0xff] %vm155, %v486
    %488 = vst.msk [vmem:[#allocation3 + $0x28] sm:$0xff] %vm280, %v486
    %v489 = vld [vmem:[#allocation2 + $0x30] sm:$0xff]
    %v490 = vld [vmem:[#allocation2 + $0x38] sm:$0xff]
    %v491 = vpack.c.bf16 %v486, %v486
    %v493 = vsel %vm325, %v491, 0
    %495 = vmatprep.subr.bf16.mxu0 0
    %496 = vmatpush1.bf16.msra.mxu0 0
    %497 = vmatprep.subr.bf16.mxu0 0
    %498 = vmatpush1.bf16.msra.mxu0 0
    %499 = vmatprep.subr.bf16.mxu0 0
    %500 = vmatpush1.bf16.msra.mxu0 0
    %501 = vmatprep.subr.bf16.mxu0 0
    %502 = vmatpush1.bf16.msra.mxu0 0
    %503 = vmatprep.subr.bf16.mxu0 %v316
    %504 = vmatpush1.bf16.msra.mxu0 %v315
    %505 = vmatprep.subr.bf16.mxu0 %v314
    %506 = vmatpush1.bf16.msra.mxu0 %v313
    %507 = vmatprep.subr.bf16.mxu0 %v312
    %508 = vmatpush1.bf16.msra.mxu0 %v311
    %509 = vmatprep.subr.bf16.mxu0 %v310
    %510 = vmatpush1.bf16.msra.mxu0 %v309
    %511 = vmatprep.subr.bf16.mxu0 0
    %512 = vmatpush2.bf16.msra.mxu0 0
    %513 = vmatprep.subr.bf16.mxu0 0
    %514 = vmatpush2.bf16.msra.mxu0 0
    %515 = vmatprep.subr.bf16.mxu0 0
    %516 = vmatpush2.bf16.msra.mxu0 0
    %517 = vmatprep.subr.bf16.mxu0 0
    %518 = vmatpush2.bf16.msra.mxu0 0
    %519 = vmatprep.subr.bf16.mxu0 0
    %520 = vmatpush2.bf16.msra.mxu0 0
    %521 = vmatprep.subr.bf16.mxu0 0
    %522 = vmatpush2.bf16.msra.mxu0 0
    %523 = vmatprep.subr.bf16.mxu0 0
    %524 = vmatpush2.bf16.msra.mxu0 0
    %525 = vmatprep.subr.bf16.mxu0 0
    %526 = vmatpush2.bf16.msra.mxu0 0
    %527 = vmatprep.mubr.bf16.mxu0 0
    %528 = vmatmul.mubr.bf16.gmra.mxu0 %v493
    %v529 = vpop.f32.mrf.mxu0
    %v530 = vadd.f32 0.0, %v529
    %v531 = vpop.f32.mrf.mxu0
    %v532 = vadd.f32 0.0, %v531
    %v533 = vpop.f32.mrf.mxu0
    %v534 = vpop.f32.mrf.mxu0
    %535 = vdwg.mxu0
    %v536 = vadd.f32 %v489, %v530
    %v537 = vadd.f32 %v490, %v532
    %v538 = vxor.u32 %v536, 2147483648
    %v539 = vxor.u32 %v537, 2147483648
    %v540 = vmul.f32 %v538, 1.442695
    %v541 = vpow.pop %v540
    %v542 = vmul.f32 %v539, 1.442695
    %v543 = vpow.pop %v542
    %v544 = vadd.f32 %v541, 1.0
    %v545 = vadd.f32 %v543, 1.0
    %v546 = vrcp.pop %v544
    %v547 = vmul.f32 1.0, %v546
    %v548 = vrcp.pop %v545
    %v549 = vmul.f32 1.0, %v548
    %v550 = vtanh.pop %v537
    %v551 = vmul.f32 %v547, %v480
    %553 = vrot.lane.b32.xlu0 %v550, 64
    %v554 = vpop.permute.xlu0 %553
    %v556 = vmul.f32 %v547, %v554
    %558 = vrot.lane.b32.xlu0 %v556, 64
    %v559 = vpop.permute.xlu0 %558
    %v561 = vadd.f32 %v551, %v559
    %v562 = vtanh.pop %v561
    %564 = vrot.lane.b32.xlu0 %v562, 64
    %v565 = vpop.permute.xlu0 %564
    %v567 = vmul.f32 %v549, %v565
    %568 = vst.msk [vmem:[#allocation3 + $0x18] sm:$0xff] %vm155, %v567
    %569 = vst.msk [vmem:[#allocation3 + $0x20] sm:$0xff] %vm280, %v567
    %v570 = vld [vmem:[#allocation2 + $0x40] sm:$0xff]
    %v571 = vld [vmem:[#allocation2 + $0x48] sm:$0xff]
    %v572 = vpack.c.bf16 %v567, %v567
    %v574 = vsel %vm325, %v572, 0
    %576 = vmatprep.subr.bf16.mxu0 0
    %577 = vmatpush1.bf16.msra.mxu0 0
    %578 = vmatprep.subr.bf16.mxu0 0
    %579 = vmatpush1.bf16.msra.mxu0 0
    %580 = vmatprep.subr.bf16.mxu0 0
    %581 = vmatpush1.bf16.msra.mxu0 0
    %582 = vmatprep.subr.bf16.mxu0 0
    %583 = vmatpush1.bf16.msra.mxu0 0
    %584 = vmatprep.subr.bf16.mxu0 %v316
    %585 = vmatpush1.bf16.msra.mxu0 %v315
    %586 = vmatprep.subr.bf16.mxu0 %v314
    %587 = vmatpush1.bf16.msra.mxu0 %v313
    %588 = vmatprep.subr.bf16.mxu0 %v312
    %589 = vmatpush1.bf16.msra.mxu0 %v311
    %590 = vmatprep.subr.bf16.mxu0 %v310
    %591 = vmatpush1.bf16.msra.mxu0 %v309
    %592 = vmatprep.subr.bf16.mxu0 0
    %593 = vmatpush2.bf16.msra.mxu0 0
    %594 = vmatprep.subr.bf16.mxu0 0
    %595 = vmatpush2.bf16.msra.mxu0 0
    %596 = vmatprep.subr.bf16.mxu0 0
    %597 = vmatpush2.bf16.msra.mxu0 0
    %598 = vmatprep.subr.bf16.mxu0 0
    %599 = vmatpush2.bf16.msra.mxu0 0
    %600 = vmatprep.subr.bf16.mxu0 0
    %601 = vmatpush2.bf16.msra.mxu0 0
    %602 = vmatprep.subr.bf16.mxu0 0
    %603 = vmatpush2.bf16.msra.mxu0 0
    %604 = vmatprep.subr.bf16.mxu0 0
    %605 = vmatpush2.bf16.msra.mxu0 0
    %606 = vmatprep.subr.bf16.mxu0 0
    %607 = vmatpush2.bf16.msra.mxu0 0
    %608 = vmatprep.mubr.bf16.mxu0 0
    %609 = vmatmul.mubr.bf16.gmra.mxu0 %v574
    %v610 = vpop.f32.mrf.mxu0
    %v611 = vadd.f32 0.0, %v610
    %v612 = vpop.f32.mrf.mxu0
    %v613 = vadd.f32 0.0, %v612
    %v614 = vpop.f32.mrf.mxu0
    %v615 = vpop.f32.mrf.mxu0
    %616 = vdwg.mxu0
    %v617 = vadd.f32 %v570, %v611
    %v618 = vadd.f32 %v571, %v613
    %v619 = vxor.u32 %v617, 2147483648
    %v620 = vxor.u32 %v618, 2147483648
    %v621 = vmul.f32 %v619, 1.442695
    %v622 = vpow.pop %v621
    %v623 = vmul.f32 %v620, 1.442695
    %v624 = vpow.pop %v623
    %v625 = vadd.f32 %v622, 1.0
    %v626 = vadd.f32 %v624, 1.0
    %v627 = vrcp.pop %v625
    %v628 = vmul.f32 1.0, %v627
    %v629 = vrcp.pop %v626
    %v630 = vmul.f32 1.0, %v629
    %v631 = vtanh.pop %v618
    %v632 = vmul.f32 %v628, %v561
    %634 = vrot.lane.b32.xlu0 %v631, 64
    %v635 = vpop.permute.xlu0 %634
    %v637 = vmul.f32 %v628, %v635
    %639 = vrot.lane.b32.xlu0 %v637, 64
    %v640 = vpop.permute.xlu0 %639
    %v642 = vadd.f32 %v632, %v640
    %v643 = vtanh.pop %v642
    %645 = vrot.lane.b32.xlu0 %v643, 64
    %v646 = vpop.permute.xlu0 %645
    %v648 = vmul.f32 %v630, %v646
    %649 = vst.msk [vmem:[#allocation3 + $0x20] sm:$0xff] %vm155, %v648
    %650 = vst.msk [vmem:[#allocation3 + $0x18] sm:$0xff] %vm280, %v648
    %v651 = vld [vmem:[#allocation2 + $0x50] sm:$0xff]
    %v652 = vld [vmem:[#allocation2 + $0x58] sm:$0xff]
    %v653 = vpack.c.bf16 %v648, %v648
    %v655 = vsel %vm325, %v653, 0
    %657 = vmatprep.subr.bf16.mxu0 0
    %658 = vmatpush1.bf16.msra.mxu0 0
    %659 = vmatprep.subr.bf16.mxu0 0
    %660 = vmatpush1.bf16.msra.mxu0 0
    %661 = vmatprep.subr.bf16.mxu0 0
    %662 = vmatpush1.bf16.msra.mxu0 0
    %663 = vmatprep.subr.bf16.mxu0 0
    %664 = vmatpush1.bf16.msra.mxu0 0
    %665 = vmatprep.subr.bf16.mxu0 %v316
    %666 = vmatpush1.bf16.msra.mxu0 %v315
    %667 = vmatprep.subr.bf16.mxu0 %v314
    %668 = vmatpush1.bf16.msra.mxu0 %v313
    %669 = vmatprep.subr.bf16.mxu0 %v312
    %670 = vmatpush1.bf16.msra.mxu0 %v311
    %671 = vmatprep.subr.bf16.mxu0 %v310
    %672 = vmatpush1.bf16.msra.mxu0 %v309
    %673 = vmatprep.subr.bf16.mxu0 0
    %674 = vmatpush2.bf16.msra.mxu0 0
    %675 = vmatprep.subr.bf16.mxu0 0
    %676 = vmatpush2.bf16.msra.mxu0 0
    %677 = vmatprep.subr.bf16.mxu0 0
    %678 = vmatpush2.bf16.msra.mxu0 0
    %679 = vmatprep.subr.bf16.mxu0 0
    %680 = vmatpush2.bf16.msra.mxu0 0
    %681 = vmatprep.subr.bf16.mxu0 0
    %682 = vmatpush2.bf16.msra.mxu0 0
    %683 = vmatprep.subr.bf16.mxu0 0
    %684 = vmatpush2.bf16.msra.mxu0 0
    %685 = vmatprep.subr.bf16.mxu0 0
    %686 = vmatpush2.bf16.msra.mxu0 0
    %687 = vmatprep.subr.bf16.mxu0 0
    %688 = vmatpush2.bf16.msra.mxu0 0
    %689 = vmatprep.mubr.bf16.mxu0 0
    %690 = vmatmul.mubr.bf16.gmra.mxu0 %v655
    %v691 = vpop.f32.mrf.mxu0
    %v692 = vadd.f32 0.0, %v691
    %v693 = vpop.f32.mrf.mxu0
    %v694 = vadd.f32 0.0, %v693
    %v695 = vpop.f32.mrf.mxu0
    %v696 = vpop.f32.mrf.mxu0
    %697 = vdwg.mxu0
    %v698 = vadd.f32 %v651, %v692
    %v699 = vadd.f32 %v652, %v694
    %v700 = vxor.u32 %v698, 2147483648
    %v701 = vxor.u32 %v699, 2147483648
    %v702 = vmul.f32 %v700, 1.442695
    %v703 = vpow.pop %v702
    %v704 = vmul.f32 %v701, 1.442695
    %v705 = vpow.pop %v704
    %v706 = vadd.f32 %v703, 1.0
    %v707 = vadd.f32 %v705, 1.0
    %v708 = vrcp.pop %v706
    %v709 = vmul.f32 1.0, %v708
    %v710 = vrcp.pop %v707
    %v711 = vmul.f32 1.0, %v710
    %v712 = vtanh.pop %v699
    %v713 = vmul.f32 %v709, %v642
    %715 = vrot.lane.b32.xlu0 %v712, 64
    %v716 = vpop.permute.xlu0 %715
    %v718 = vmul.f32 %v709, %v716
    %720 = vrot.lane.b32.xlu0 %v718, 64
    %v721 = vpop.permute.xlu0 %720
    %v723 = vadd.f32 %v713, %v721
    %v724 = vtanh.pop %v723
    %726 = vrot.lane.b32.xlu0 %v724, 64
    %v727 = vpop.permute.xlu0 %726
    %v729 = vmul.f32 %v711, %v727
    %730 = vst.msk [vmem:[#allocation3 + $0x28] sm:$0xff] %vm155, %v729
    %731 = vst.msk [vmem:[#allocation3 + $0x10] sm:$0xff] %vm280, %v729
    %v732 = vld [vmem:[#allocation2 + $0x60] sm:$0xff]
    %v733 = vld [vmem:[#allocation2 + $0x68] sm:$0xff]
    %v734 = vpack.c.bf16 %v729, %v729
    %v736 = vsel %vm325, %v734, 0
    %738 = vmatprep.subr.bf16.mxu0 0
    %739 = vmatpush1.bf16.msra.mxu0 0
    %740 = vmatprep.subr.bf16.mxu0 0
    %741 = vmatpush1.bf16.msra.mxu0 0
    %742 = vmatprep.subr.bf16.mxu0 0
    %743 = vmatpush1.bf16.msra.mxu0 0
    %744 = vmatprep.subr.bf16.mxu0 0
    %745 = vmatpush1.bf16.msra.mxu0 0
    %746 = vmatprep.subr.bf16.mxu0 %v316
    %747 = vmatpush1.bf16.msra.mxu0 %v315
    %748 = vmatprep.subr.bf16.mxu0 %v314
    %749 = vmatpush1.bf16.msra.mxu0 %v313
    %750 = vmatprep.subr.bf16.mxu0 %v312
    %751 = vmatpush1.bf16.msra.mxu0 %v311
    %752 = vmatprep.subr.bf16.mxu0 %v310
    %753 = vmatpush1.bf16.msra.mxu0 %v309
    %754 = vmatprep.subr.bf16.mxu0 0
    %755 = vmatpush2.bf16.msra.mxu0 0
    %756 = vmatprep.subr.bf16.mxu0 0
    %757 = vmatpush2.bf16.msra.mxu0 0
    %758 = vmatprep.subr.bf16.mxu0 0
    %759 = vmatpush2.bf16.msra.mxu0 0
    %760 = vmatprep.subr.bf16.mxu0 0
    %761 = vmatpush2.bf16.msra.mxu0 0
    %762 = vmatprep.subr.bf16.mxu0 0
    %763 = vmatpush2.bf16.msra.mxu0 0
    %764 = vmatprep.subr.bf16.mxu0 0
    %765 = vmatpush2.bf16.msra.mxu0 0
    %766 = vmatprep.subr.bf16.mxu0 0
    %767 = vmatpush2.bf16.msra.mxu0 0
    %768 = vmatprep.subr.bf16.mxu0 0
    %769 = vmatpush2.bf16.msra.mxu0 0
    %770 = vmatprep.mubr.bf16.mxu0 0
    %771 = vmatmul.mubr.bf16.gmra.mxu0 %v736
    %v772 = vpop.f32.mrf.mxu0
    %v773 = vadd.f32 0.0, %v772
    %v774 = vpop.f32.mrf.mxu0
    %v775 = vadd.f32 0.0, %v774
    %v776 = vpop.f32.mrf.mxu0
    %v777 = vpop.f32.mrf.mxu0
    %778 = vdwg.mxu0
    %v779 = vadd.f32 %v732, %v773
    %v780 = vadd.f32 %v733, %v775
    %v781 = vxor.u32 %v779, 2147483648
    %v782 = vxor.u32 %v780, 2147483648
    %v783 = vmul.f32 %v781, 1.442695
    %v784 = vpow.pop %v783
    %v785 = vmul.f32 %v782, 1.442695
    %v786 = vpow.pop %v785
    %v787 = vadd.f32 %v784, 1.0
    %v788 = vadd.f32 %v786, 1.0
    %v789 = vrcp.pop %v787
    %v790 = vmul.f32 1.0, %v789
    %v791 = vrcp.pop %v788
    %v792 = vmul.f32 1.0, %v791
    %v793 = vtanh.pop %v780
    %v794 = vmul.f32 %v790, %v723
    %796 = vrot.lane.b32.xlu0 %v793, 64
    %v797 = vpop.permute.xlu0 %796
    %v799 = vmul.f32 %v790, %v797
    %801 = vrot.lane.b32.xlu0 %v799, 64
    %v802 = vpop.permute.xlu0 %801
    %v804 = vadd.f32 %v794, %v802
    %v805 = vtanh.pop %v804
    %807 = vrot.lane.b32.xlu0 %v805, 64
    %v808 = vpop.permute.xlu0 %807
    %v810 = vmul.f32 %v792, %v808
    %811 = vst.msk [vmem:[#allocation3 + $0x30] sm:$0xff] %vm155, %v810
    %812 = vst.msk [vmem:[#allocation3 + $0x8] sm:$0xff] %vm280, %v810
    %v813 = vld [vmem:[#allocation2 + $0x70] sm:$0xff]
    %v814 = vld [vmem:[#allocation2 + $0x78] sm:$0xff]
    %v815 = vpack.c.bf16 %v810, %v810
    %v817 = vsel %vm325, %v815, 0
    %819 = vmatprep.subr.bf16.mxu0 0
    %820 = vmatpush1.bf16.msra.mxu0 0
    %821 = vmatprep.subr.bf16.mxu0 0
    %822 = vmatpush1.bf16.msra.mxu0 0
    %823 = vmatprep.subr.bf16.mxu0 0
    %824 = vmatpush1.bf16.msra.mxu0 0
    %825 = vmatprep.subr.bf16.mxu0 0
    %826 = vmatpush1.bf16.msra.mxu0 0
    %827 = vmatprep.subr.bf16.mxu0 %v316
    %828 = vmatpush1.bf16.msra.mxu0 %v315
    %829 = vmatprep.subr.bf16.mxu0 %v314
    %830 = vmatpush1.bf16.msra.mxu0 %v313
    %831 = vmatprep.subr.bf16.mxu0 %v312
    %832 = vmatpush1.bf16.msra.mxu0 %v311
    %833 = vmatprep.subr.bf16.mxu0 %v310
    %834 = vmatpush1.bf16.msra.mxu0 %v309
    %835 = vmatprep.subr.bf16.mxu0 0
    %836 = vmatpush2.bf16.msra.mxu0 0
    %837 = vmatprep.subr.bf16.mxu0 0
    %838 = vmatpush2.bf16.msra.mxu0 0
    %839 = vmatprep.subr.bf16.mxu0 0
    %840 = vmatpush2.bf16.msra.mxu0 0
    %841 = vmatprep.subr.bf16.mxu0 0
    %842 = vmatpush2.bf16.msra.mxu0 0
    %843 = vmatprep.subr.bf16.mxu0 0
    %844 = vmatpush2.bf16.msra.mxu0 0
    %845 = vmatprep.subr.bf16.mxu0 0
    %846 = vmatpush2.bf16.msra.mxu0 0
    %847 = vmatprep.subr.bf16.mxu0 0
    %848 = vmatpush2.bf16.msra.mxu0 0
    %849 = vmatprep.subr.bf16.mxu0 0
    %850 = vmatpush2.bf16.msra.mxu0 0
    %851 = vmatprep.mubr.bf16.mxu0 0
    %852 = vmatmul.mubr.bf16.gmra.mxu0 %v817
    %v853 = vpop.f32.mrf.mxu0
    %v854 = vadd.f32 0.0, %v853
    %v855 = vpop.f32.mrf.mxu0
    %v856 = vadd.f32 0.0, %v855
    %v857 = vpop.f32.mrf.mxu0
    %v858 = vpop.f32.mrf.mxu0
    %859 = vdwg.mxu0
    %v860 = vadd.f32 %v813, %v854
    %v861 = vadd.f32 %v814, %v856
    %v862 = vxor.u32 %v860, 2147483648
    %v863 = vxor.u32 %v861, 2147483648
    %v864 = vmul.f32 %v862, 1.442695
    %v865 = vpow.pop %v864
    %v866 = vmul.f32 %v863, 1.442695
    %v867 = vpow.pop %v866
    %v868 = vadd.f32 %v865, 1.0
    %v869 = vadd.f32 %v867, 1.0
    %v870 = vrcp.pop %v868
    %v871 = vmul.f32 1.0, %v870
    %v872 = vrcp.pop %v869
    %v873 = vmul.f32 1.0, %v872
    %v874 = vtanh.pop %v861
    %v875 = vmul.f32 %v871, %v804
    %877 = vrot.lane.b32.xlu0 %v874, 64
    %v878 = vpop.permute.xlu0 %877
    %v880 = vmul.f32 %v871, %v878
    %882 = vrot.lane.b32.xlu0 %v880, 64
    %v883 = vpop.permute.xlu0 %882
    %v885 = vadd.f32 %v875, %v883
    %v886 = vtanh.pop %v885
    %888 = vrot.lane.b32.xlu0 %v886, 64
    %v889 = vpop.permute.xlu0 %888
    %v891 = vmul.f32 %v873, %v889
    %892 = vst.msk [vmem:[#allocation3 + $0x38] sm:$0xff] %vm155, %v891
    %893 = vst.msk [vmem:[#allocation3] sm:$0xff] %vm280, %v891
    %v894 = vld [vmem:[#allocation6 + $0x60] sm:$0xf]
    %v895 = vld [vmem:[#allocation6 + $0x68] sm:$0xf]
    %v896 = vld [vmem:[#allocation6 + $0x70] sm:$0xf]
    %v897 = vld [vmem:[#allocation6 + $0x78] sm:$0xf]
    %v898 = vld [vmem:[#allocation6 + $0x80] sm:$0xf]
    %v899 = vld [vmem:[#allocation6 + $0x88] sm:$0xf]
    %v900 = vld [vmem:[#allocation6 + $0x90] sm:$0xf]
    %v901 = vld [vmem:[#allocation6 + $0x98] sm:$0xf]
    %v902 = vld [vmem:[#allocation8 + $0x1] sm:$0x1]
    %v903 = vld [vmem:[#allocation3] sm:$0xff]
    %v904 = vld [vmem:[#allocation3 + $0x8] sm:$0xff]
    %v905 = vld [vmem:[#allocation3 + $0x10] sm:$0xff]
    %v906 = vld [vmem:[#allocation3 + $0x18] sm:$0xff]
    %v907 = vld [vmem:[#allocation3 + $0x20] sm:$0xff]
    %v908 = vld [vmem:[#allocation3 + $0x28] sm:$0xff]
    %v909 = vld [vmem:[#allocation3 + $0x30] sm:$0xff]
    %v910 = vld [vmem:[#allocation3 + $0x38] sm:$0xff]
    %v911 = vpack.c.bf16 %v904, %v903
    %v912 = vpack.c.bf16 %v906, %v905
    %v913 = vpack.c.bf16 %v908, %v907
    %v914 = vpack.c.bf16 %v910, %v909
    %v915 = vlaneseq
    %v916 = vshrl.u32 %v915, 7
    %v917 = vsub.s32 0, %v916
    %v918 = vrot.slane %v902, %v917
    %v927 = vunpack.c.l.b16 %v894
    %v928 = vunpack.c.l.b16 %v895
    %v929 = vunpack.c.l.b16 %v896
    %v930 = vunpack.c.l.b16 %v897
    %v931 = vunpack.c.l.b16 %v898
    %v932 = vunpack.c.l.b16 %v899
    %v933 = vunpack.c.l.b16 %v900
    %v934 = vunpack.c.l.b16 %v901
    %v935 = vpack.c.b16 %v928, %v927
    %v936 = vpack.c.b16 %v930, %v929
    %v937 = vpack.c.b16 %v932, %v931
    %v938 = vpack.c.b16 %v934, %v933
    %v944 = vsel %vm325, %v911, 0
    %v947 = vsel %vm325, %v912, 0
    %v950 = vsel %vm325, %v913, 0
    %v953 = vsel %vm325, %v914, 0
    %955 = vmatprep.subr.bf16.mxu0 0
    %956 = vmatpush1.bf16.msra.mxu0 0
    %957 = vmatprep.subr.bf16.mxu0 0
    %958 = vmatpush1.bf16.msra.mxu0 0
    %959 = vmatprep.subr.bf16.mxu0 0
    %960 = vmatpush1.bf16.msra.mxu0 0
    %961 = vmatprep.subr.bf16.mxu0 0
    %962 = vmatpush1.bf16.msra.mxu0 0
    %963 = vmatprep.subr.bf16.mxu0 0
    %964 = vmatpush1.bf16.msra.mxu0 %v938
    %965 = vmatprep.subr.bf16.mxu0 0
    %966 = vmatpush1.bf16.msra.mxu0 %v937
    %967 = vmatprep.subr.bf16.mxu0 0
    %968 = vmatpush1.bf16.msra.mxu0 %v936
    %969 = vmatprep.subr.bf16.mxu0 0
    %970 = vmatpush1.bf16.msra.mxu0 %v935
    %971 = vmatprep.subr.bf16.mxu0 0
    %972 = vmatpush2.bf16.msra.mxu0 0
    %973 = vmatprep.subr.bf16.mxu0 0
    %974 = vmatpush2.bf16.msra.mxu0 0
    %975 = vmatprep.subr.bf16.mxu0 0
    %976 = vmatpush2.bf16.msra.mxu0 0
    %977 = vmatprep.subr.bf16.mxu0 0
    %978 = vmatpush2.bf16.msra.mxu0 0
    %979 = vmatprep.subr.bf16.mxu0 0
    %980 = vmatpush2.bf16.msra.mxu0 0
    %981 = vmatprep.subr.bf16.mxu0 0
    %982 = vmatpush2.bf16.msra.mxu0 0
    %983 = vmatprep.subr.bf16.mxu0 0
    %984 = vmatpush2.bf16.msra.mxu0 0
    %985 = vmatprep.subr.bf16.mxu0 0
    %986 = vmatpush2.bf16.msra.mxu0 0
    %987 = vmatprep.mubr.bf16.mxu0 0
    %988 = vmatmul.mubr.bf16.gmra.mxu0 %v944
    %v989 = vpop.f32.mrf.mxu0
    %v990 = vadd.f32 %v918, %v989
    %v991 = vpop.f32.mrf.mxu0
    %v992 = vpop.f32.mrf.mxu0
    %v993 = vadd.f32 %v918, %v992
    %v994 = vpop.f32.mrf.mxu0
    %995 = vmatprep.mubr.bf16.mxu0 0
    %996 = vmatmul.mubr.bf16.gmra.mxu0 %v947
    %v997 = vpop.f32.mrf.mxu0
    %v998 = vadd.f32 %v918, %v997
    %v999 = vpop.f32.mrf.mxu0
    %v1000 = vpop.f32.mrf.mxu0
    %v1001 = vadd.f32 %v918, %v1000
    %v1002 = vpop.f32.mrf.mxu0
    %1003 = vmatprep.mubr.bf16.mxu0 0
    %1004 = vmatmul.mubr.bf16.gmra.mxu0 %v950
    %v1005 = vpop.f32.mrf.mxu0
    %v1006 = vadd.f32 %v918, %v1005
    %v1007 = vpop.f32.mrf.mxu0
    %v1008 = vpop.f32.mrf.mxu0
    %v1009 = vadd.f32 %v918, %v1008
    %v1010 = vpop.f32.mrf.mxu0
    %1011 = vmatprep.mubr.bf16.mxu0 0
    %1012 = vmatmul.mubr.bf16.gmra.mxu0 %v953
    %v1013 = vpop.f32.mrf.mxu0
    %v1014 = vadd.f32 %v918, %v1013
    %v1015 = vpop.f32.mrf.mxu0
    %v1016 = vpop.f32.mrf.mxu0
    %v1017 = vadd.f32 %v918, %v1016
    %v1018 = vpop.f32.mrf.mxu0
    %1019 = vdwg.mxu0
    %v1020 = vxor.u32 %v1017, 2147483648
    %v1021 = vmul.f32 %v1020, 1.442695
    %v1022 = vpow.pop %v1021
    %v1023 = vadd.f32 %v1022, 1.0
    %v1024 = vrcp.pop %v1023
    %v1025 = vmul.f32 1.0, %v1024
    %v1026 = vtanh.pop %v1017
    %1028 = vrot.lane.b32.xlu0 %v1026, 32
    %v1029 = vpop.permute.xlu0 %1028
    %v1031 = vmul.f32 %v1025, %v1029
    %v1032 = vtanh.pop %v1031
    %1034 = vrot.lane.b32.xlu0 %v1032, 64
    %v1035 = vpop.permute.xlu0 %1034
    %v1037 = vmul.f32 %v1025, %v1035
    %v1038 = vpack.c.bf16 %v1037, %v1037
    %1040 = vrot.lane.b32.xlu0 %v1038, 64
    %v1041 = vpop.permute.xlu0 %1040
    %v1046 = vunpack.c.l.b16 %v62
    %v1047 = vunpack.c.l.b16 %v63
    %v1048 = vunpack.c.l.b16 %v64
    %v1049 = vunpack.c.l.b16 %v65
    %v1050 = vpack.c.b16 %v1047, %v1046
    %v1051 = vpack.c.b16 %v1049, %v1048
    %v1055 = vsel %vm155, %v1041, 0
    %1057 = vmatprep.subr.bf16.mxu0 0
    %1058 = vmatpush1.bf16.msra.mxu0 0
    %1059 = vmatprep.subr.bf16.mxu0 0
    %1060 = vmatpush1.bf16.msra.mxu0 0
    %1061 = vmatprep.subr.bf16.mxu0 0
    %1062 = vmatpush1.bf16.msra.mxu0 0
    %1063 = vmatprep.subr.bf16.mxu0 0
    %1064 = vmatpush1.bf16.msra.mxu0 0
    %1065 = vmatprep.subr.bf16.mxu0 0
    %1066 = vmatpush1.bf16.msra.mxu0 0
    %1067 = vmatprep.subr.bf16.mxu0 0
    %1068 = vmatpush1.bf16.msra.mxu0 0
    %1069 = vmatprep.subr.bf16.mxu0 0
    %1070 = vmatpush1.bf16.msra.mxu0 %v1051
    %1071 = vmatprep.subr.bf16.mxu0 0
    %1072 = vmatpush1.bf16.msra.mxu0 %v1050
    %1073 = vmatprep.subr.bf16.mxu0 0
    %1074 = vmatpush2.bf16.msra.mxu0 0
    %1075 = vmatprep.subr.bf16.mxu0 0
    %1076 = vmatpush2.bf16.msra.mxu0 0
    %1077 = vmatprep.subr.bf16.mxu0 0
    %1078 = vmatpush2.bf16.msra.mxu0 0
    %1079 = vmatprep.subr.bf16.mxu0 0
    %1080 = vmatpush2.bf16.msra.mxu0 0
    %1081 = vmatprep.subr.bf16.mxu0 0
    %1082 = vmatpush2.bf16.msra.mxu0 0
    %1083 = vmatprep.subr.bf16.mxu0 0
    %1084 = vmatpush2.bf16.msra.mxu0 0
    %1085 = vmatprep.subr.bf16.mxu0 0
    %1086 = vmatpush2.bf16.msra.mxu0 0
    %1087 = vmatprep.subr.bf16.mxu0 0
    %1088 = vmatpush2.bf16.msra.mxu0 0
    %1089 = vmatprep.mubr.bf16.mxu0 0
    %1090 = vmatmul.mubr.bf16.gmra.mxu0 %v1055
    %v1091 = vpop.f32.mrf.mxu0
    %v1092 = vadd.f32 0.0, %v1091
    %v1093 = vpop.f32.mrf.mxu0
    %v1094 = vpop.f32.mrf.mxu0
    %v1095 = vpop.f32.mrf.mxu0
    %1096 = vdwg.mxu0
    %v1097 = vadd.f32 %v1014, %v1092
    %v1098 = vxor.u32 %v1097, 2147483648
    %v1099 = vmul.f32 %v1098, 1.442695
    %v1100 = vpow.pop %v1099
    %v1101 = vadd.f32 %v1100, 1.0
    %v1102 = vrcp.pop %v1101
    %v1103 = vmul.f32 1.0, %v1102
    %v1104 = vtanh.pop %v1097
    %1106 = vrot.lane.b32.xlu0 %v1031, 32
    %v1107 = vpop.permute.xlu0 %1106
    %v1109 = vmul.f32 %v1103, %v1107
    %1111 = vrot.lane.b32.xlu0 %v1104, 32
    %v1112 = vpop.permute.xlu0 %1111
    %v1114 = vmul.f32 %v1103, %v1112
    %1116 = vrot.lane.b32.xlu0 %v1114, 32
    %v1117 = vpop.permute.xlu0 %1116
    %v1119 = vadd.f32 %v1109, %v1117
    %v1120 = vtanh.pop %v1119
    %1122 = vrot.lane.b32.xlu0 %v1120, 32
    %v1123 = vpop.permute.xlu0 %1122
    %v1125 = vmul.f32 %v1103, %v1123
    %v1126 = vpack.c.bf16 %v1125, %v1125
    %1128 = vrot.lane.b32.xlu0 %v1126, 64
    %v1129 = vpop.permute.xlu0 %1128
    %v1131 = vsel %vm155, %v1129, 0
    %1133 = vmatprep.subr.bf16.mxu0 0
    %1134 = vmatpush1.bf16.msra.mxu0 0
    %1135 = vmatprep.subr.bf16.mxu0 0
    %1136 = vmatpush1.bf16.msra.mxu0 0
    %1137 = vmatprep.subr.bf16.mxu0 0
    %1138 = vmatpush1.bf16.msra.mxu0 0
    %1139 = vmatprep.subr.bf16.mxu0 0
    %1140 = vmatpush1.bf16.msra.mxu0 0
    %1141 = vmatprep.subr.bf16.mxu0 0
    %1142 = vmatpush1.bf16.msra.mxu0 0
    %1143 = vmatprep.subr.bf16.mxu0 0
    %1144 = vmatpush1.bf16.msra.mxu0 0
    %1145 = vmatprep.subr.bf16.mxu0 0
    %1146 = vmatpush1.bf16.msra.mxu0 %v1051
    %1147 = vmatprep.subr.bf16.mxu0 0
    %1148 = vmatpush1.bf16.msra.mxu0 %v1050
    %1149 = vmatprep.subr.bf16.mxu0 0
    %1150 = vmatpush2.bf16.msra.mxu0 0
    %1151 = vmatprep.subr.bf16.mxu0 0
    %1152 = vmatpush2.bf16.msra.mxu0 0
    %1153 = vmatprep.subr.bf16.mxu0 0
    %1154 = vmatpush2.bf16.msra.mxu0 0
    %1155 = vmatprep.subr.bf16.mxu0 0
    %1156 = vmatpush2.bf16.msra.mxu0 0
    %1157 = vmatprep.subr.bf16.mxu0 0
    %1158 = vmatpush2.bf16.msra.mxu0 0
    %1159 = vmatprep.subr.bf16.mxu0 0
    %1160 = vmatpush2.bf16.msra.mxu0 0
    %1161 = vmatprep.subr.bf16.mxu0 0
    %1162 = vmatpush2.bf16.msra.mxu0 0
    %1163 = vmatprep.subr.bf16.mxu0 0
    %1164 = vmatpush2.bf16.msra.mxu0 0
    %1165 = vmatprep.mubr.bf16.mxu0 0
    %1166 = vmatmul.mubr.bf16.gmra.mxu0 %v1131
    %v1167 = vpop.f32.mrf.mxu0
    %v1168 = vadd.f32 0.0, %v1167
    %v1169 = vpop.f32.mrf.mxu0
    %v1170 = vpop.f32.mrf.mxu0
    %v1171 = vpop.f32.mrf.mxu0
    %1172 = vdwg.mxu0
    %v1173 = vadd.f32 %v1009, %v1168
    %v1174 = vxor.u32 %v1173, 2147483648
    %v1175 = vmul.f32 %v1174, 1.442695
    %v1176 = vpow.pop %v1175
    %v1177 = vadd.f32 %v1176, 1.0
    %v1178 = vrcp.pop %v1177
    %v1179 = vmul.f32 1.0, %v1178
    %v1180 = vtanh.pop %v1173
    %v1181 = vmul.f32 %v1179, %v1119
    %1183 = vrot.lane.b32.xlu0 %v1180, 32
    %v1184 = vpop.permute.xlu0 %1183
    %v1186 = vmul.f32 %v1179, %v1184
    %1188 = vrot.lane.b32.xlu0 %v1186, 32
    %v1189 = vpop.permute.xlu0 %1188
    %v1191 = vadd.f32 %v1181, %v1189
    %v1192 = vtanh.pop %v1191
    %1194 = vrot.lane.b32.xlu0 %v1192, 32
    %v1195 = vpop.permute.xlu0 %1194
    %v1197 = vmul.f32 %v1179, %v1195
    %v1198 = vpack.c.bf16 %v1197, %v1197
    %1200 = vrot.lane.b32.xlu0 %v1198, 64
    %v1201 = vpop.permute.xlu0 %1200
    %v1203 = vsel %vm155, %v1201, 0
    %1205 = vmatprep.subr.bf16.mxu0 0
    %1206 = vmatpush1.bf16.msra.mxu0 0
    %1207 = vmatprep.subr.bf16.mxu0 0
    %1208 = vmatpush1.bf16.msra.mxu0 0
    %1209 = vmatprep.subr.bf16.mxu0 0
    %1210 = vmatpush1.bf16.msra.mxu0 0
    %1211 = vmatprep.subr.bf16.mxu0 0
    %1212 = vmatpush1.bf16.msra.mxu0 0
    %1213 = vmatprep.subr.bf16.mxu0 0
    %1214 = vmatpush1.bf16.msra.mxu0 0
    %1215 = vmatprep.subr.bf16.mxu0 0
    %1216 = vmatpush1.bf16.msra.mxu0 0
    %1217 = vmatprep.subr.bf16.mxu0 0
    %1218 = vmatpush1.bf16.msra.mxu0 %v1051
    %1219 = vmatprep.subr.bf16.mxu0 0
    %1220 = vmatpush1.bf16.msra.mxu0 %v1050
    %1221 = vmatprep.subr.bf16.mxu0 0
    %1222 = vmatpush2.bf16.msra.mxu0 0
    %1223 = vmatprep.subr.bf16.mxu0 0
    %1224 = vmatpush2.bf16.msra.mxu0 0
    %1225 = vmatprep.subr.bf16.mxu0 0
    %1226 = vmatpush2.bf16.msra.mxu0 0
    %1227 = vmatprep.subr.bf16.mxu0 0
    %1228 = vmatpush2.bf16.msra.mxu0 0
    %1229 = vmatprep.subr.bf16.mxu0 0
    %1230 = vmatpush2.bf16.msra.mxu0 0
    %1231 = vmatprep.subr.bf16.mxu0 0
    %1232 = vmatpush2.bf16.msra.mxu0 0
    %1233 = vmatprep.subr.bf16.mxu0 0
    %1234 = vmatpush2.bf16.msra.mxu0 0
    %1235 = vmatprep.subr.bf16.mxu0 0
    %1236 = vmatpush2.bf16.msra.mxu0 0
    %1237 = vmatprep.mubr.bf16.mxu0 0
    %1238 = vmatmul.mubr.bf16.gmra.mxu0 %v1203
    %v1239 = vpop.f32.mrf.mxu0
    %v1240 = vadd.f32 0.0, %v1239
    %v1241 = vpop.f32.mrf.mxu0
    %v1242 = vpop.f32.mrf.mxu0
    %v1243 = vpop.f32.mrf.mxu0
    %1244 = vdwg.mxu0
    %v1245 = vadd.f32 %v1006, %v1240
    %v1246 = vxor.u32 %v1245, 2147483648
    %v1247 = vmul.f32 %v1246, 1.442695
    %v1248 = vpow.pop %v1247
    %v1249 = vadd.f32 %v1248, 1.0
    %v1250 = vrcp.pop %v1249
    %v1251 = vmul.f32 1.0, %v1250
    %v1252 = vtanh.pop %v1245
    %v1253 = vmul.f32 %v1251, %v1191
    %1255 = vrot.lane.b32.xlu0 %v1252, 32
    %v1256 = vpop.permute.xlu0 %1255
    %v1258 = vmul.f32 %v1251, %v1256
    %1260 = vrot.lane.b32.xlu0 %v1258, 32
    %v1261 = vpop.permute.xlu0 %1260
    %v1263 = vadd.f32 %v1253, %v1261
    %v1264 = vtanh.pop %v1263
    %1266 = vrot.lane.b32.xlu0 %v1264, 32
    %v1267 = vpop.permute.xlu0 %1266
    %v1269 = vmul.f32 %v1251, %v1267
    %v1270 = vpack.c.bf16 %v1269, %v1269
    %1272 = vrot.lane.b32.xlu0 %v1270, 64
    %v1273 = vpop.permute.xlu0 %1272
    %v1275 = vsel %vm155, %v1273, 0
    %1277 = vmatprep.subr.bf16.mxu0 0
    %1278 = vmatpush1.bf16.msra.mxu0 0
    %1279 = vmatprep.subr.bf16.mxu0 0
    %1280 = vmatpush1.bf16.msra.mxu0 0
    %1281 = vmatprep.subr.bf16.mxu0 0
    %1282 = vmatpush1.bf16.msra.mxu0 0
    %1283 = vmatprep.subr.bf16.mxu0 0
    %1284 = vmatpush1.bf16.msra.mxu0 0
    %1285 = vmatprep.subr.bf16.mxu0 0
    %1286 = vmatpush1.bf16.msra.mxu0 0
    %1287 = vmatprep.subr.bf16.mxu0 0
    %1288 = vmatpush1.bf16.msra.mxu0 0
    %1289 = vmatprep.subr.bf16.mxu0 0
    %1290 = vmatpush1.bf16.msra.mxu0 %v1051
    %1291 = vmatprep.subr.bf16.mxu0 0
    %1292 = vmatpush1.bf16.msra.mxu0 %v1050
    %1293 = vmatprep.subr.bf16.mxu0 0
    %1294 = vmatpush2.bf16.msra.mxu0 0
    %1295 = vmatprep.subr.bf16.mxu0 0
    %1296 = vmatpush2.bf16.msra.mxu0 0
    %1297 = vmatprep.subr.bf16.mxu0 0
    %1298 = vmatpush2.bf16.msra.mxu0 0
    %1299 = vmatprep.subr.bf16.mxu0 0
    %1300 = vmatpush2.bf16.msra.mxu0 0
    %1301 = vmatprep.subr.bf16.mxu0 0
    %1302 = vmatpush2.bf16.msra.mxu0 0
    %1303 = vmatprep.subr.bf16.mxu0 0
    %1304 = vmatpush2.bf16.msra.mxu0 0
    %1305 = vmatprep.subr.bf16.mxu0 0
    %1306 = vmatpush2.bf16.msra.mxu0 0
    %1307 = vmatprep.subr.bf16.mxu0 0
    %1308 = vmatpush2.bf16.msra.mxu0 0
    %1309 = vmatprep.mubr.bf16.mxu0 0
    %1310 = vmatmul.mubr.bf16.gmra.mxu0 %v1275
    %v1311 = vpop.f32.mrf.mxu0
    %v1312 = vadd.f32 0.0, %v1311
    %v1313 = vpop.f32.mrf.mxu0
    %v1314 = vpop.f32.mrf.mxu0
    %v1315 = vpop.f32.mrf.mxu0
    %1316 = vdwg.mxu0
    %v1317 = vadd.f32 %v1001, %v1312
    %v1318 = vxor.u32 %v1317, 2147483648
    %v1319 = vmul.f32 %v1318, 1.442695
    %v1320 = vpow.pop %v1319
    %v1321 = vadd.f32 %v1320, 1.0
    %v1322 = vrcp.pop %v1321
    %v1323 = vmul.f32 1.0, %v1322
    %v1324 = vtanh.pop %v1317
    %v1325 = vmul.f32 %v1323, %v1263
    %1327 = vrot.lane.b32.xlu0 %v1324, 32
    %v1328 = vpop.permute.xlu0 %1327
    %v1330 = vmul.f32 %v1323, %v1328
    %1332 = vrot.lane.b32.xlu0 %v1330, 32
    %v1333 = vpop.permute.xlu0 %1332
    %v1335 = vadd.f32 %v1325, %v1333
    %v1336 = vtanh.pop %v1335
    %1338 = vrot.lane.b32.xlu0 %v1336, 32
    %v1339 = vpop.permute.xlu0 %1338
    %v1341 = vmul.f32 %v1323, %v1339
    %v1342 = vpack.c.bf16 %v1341, %v1341
    %1344 = vrot.lane.b32.xlu0 %v1342, 64
    %v1345 = vpop.permute.xlu0 %1344
    %v1347 = vsel %vm155, %v1345, 0
    %1349 = vmatprep.subr.bf16.mxu0 0
    %1350 = vmatpush1.bf16.msra.mxu0 0
    %1351 = vmatprep.subr.bf16.mxu0 0
    %1352 = vmatpush1.bf16.msra.mxu0 0
    %1353 = vmatprep.subr.bf16.mxu0 0
    %1354 = vmatpush1.bf16.msra.mxu0 0
    %1355 = vmatprep.subr.bf16.mxu0 0
    %1356 = vmatpush1.bf16.msra.mxu0 0
    %1357 = vmatprep.subr.bf16.mxu0 0
    %1358 = vmatpush1.bf16.msra.mxu0 0
    %1359 = vmatprep.subr.bf16.mxu0 0
    %1360 = vmatpush1.bf16.msra.mxu0 0
    %1361 = vmatprep.subr.bf16.mxu0 0
    %1362 = vmatpush1.bf16.msra.mxu0 %v1051
    %1363 = vmatprep.subr.bf16.mxu0 0
    %1364 = vmatpush1.bf16.msra.mxu0 %v1050
    %1365 = vmatprep.subr.bf16.mxu0 0
    %1366 = vmatpush2.bf16.msra.mxu0 0
    %1367 = vmatprep.subr.bf16.mxu0 0
    %1368 = vmatpush2.bf16.msra.mxu0 0
    %1369 = vmatprep.subr.bf16.mxu0 0
    %1370 = vmatpush2.bf16.msra.mxu0 0
    %1371 = vmatprep.subr.bf16.mxu0 0
    %1372 = vmatpush2.bf16.msra.mxu0 0
    %1373 = vmatprep.subr.bf16.mxu0 0
    %1374 = vmatpush2.bf16.msra.mxu0 0
    %1375 = vmatprep.subr.bf16.mxu0 0
    %1376 = vmatpush2.bf16.msra.mxu0 0
    %1377 = vmatprep.subr.bf16.mxu0 0
    %1378 = vmatpush2.bf16.msra.mxu0 0
    %1379 = vmatprep.subr.bf16.mxu0 0
    %1380 = vmatpush2.bf16.msra.mxu0 0
    %1381 = vmatprep.mubr.bf16.mxu0 0
    %1382 = vmatmul.mubr.bf16.gmra.mxu0 %v1347
    %v1383 = vpop.f32.mrf.mxu0
    %v1384 = vadd.f32 0.0, %v1383
    %v1385 = vpop.f32.mrf.mxu0
    %v1386 = vpop.f32.mrf.mxu0
    %v1387 = vpop.f32.mrf.mxu0
    %1388 = vdwg.mxu0
    %v1389 = vadd.f32 %v998, %v1384
    %v1390 = vxor.u32 %v1389, 2147483648
    %v1391 = vmul.f32 %v1390, 1.442695
    %v1392 = vpow.pop %v1391
    %v1393 = vadd.f32 %v1392, 1.0
    %v1394 = vrcp.pop %v1393
    %v1395 = vmul.f32 1.0, %v1394
    %v1396 = vtanh.pop %v1389
    %v1397 = vmul.f32 %v1395, %v1335
    %1399 = vrot.lane.b32.xlu0 %v1396, 32
    %v1400 = vpop.permute.xlu0 %1399
    %v1402 = vmul.f32 %v1395, %v1400
    %1404 = vrot.lane.b32.xlu0 %v1402, 32
    %v1405 = vpop.permute.xlu0 %1404
    %v1407 = vadd.f32 %v1397, %v1405
    %v1408 = vtanh.pop %v1407
    %1410 = vrot.lane.b32.xlu0 %v1408, 32
    %v1411 = vpop.permute.xlu0 %1410
    %v1413 = vmul.f32 %v1395, %v1411
    %v1414 = vpack.c.bf16 %v1413, %v1413
    %1416 = vrot.lane.b32.xlu0 %v1414, 64
    %v1417 = vpop.permute.xlu0 %1416
    %v1419 = vsel %vm155, %v1417, 0
    %1421 = vmatprep.subr.bf16.mxu0 0
    %1422 = vmatpush1.bf16.msra.mxu0 0
    %1423 = vmatprep.subr.bf16.mxu0 0
    %1424 = vmatpush1.bf16.msra.mxu0 0
    %1425 = vmatprep.subr.bf16.mxu0 0
    %1426 = vmatpush1.bf16.msra.mxu0 0
    %1427 = vmatprep.subr.bf16.mxu0 0
    %1428 = vmatpush1.bf16.msra.mxu0 0
    %1429 = vmatprep.subr.bf16.mxu0 0
    %1430 = vmatpush1.bf16.msra.mxu0 0
    %1431 = vmatprep.subr.bf16.mxu0 0
    %1432 = vmatpush1.bf16.msra.mxu0 0
    %1433 = vmatprep.subr.bf16.mxu0 0
    %1434 = vmatpush1.bf16.msra.mxu0 %v1051
    %1435 = vmatprep.subr.bf16.mxu0 0
    %1436 = vmatpush1.bf16.msra.mxu0 %v1050
    %1437 = vmatprep.subr.bf16.mxu0 0
    %1438 = vmatpush2.bf16.msra.mxu0 0
    %1439 = vmatprep.subr.bf16.mxu0 0
    %1440 = vmatpush2.bf16.msra.mxu0 0
    %1441 = vmatprep.subr.bf16.mxu0 0
    %1442 = vmatpush2.bf16.msra.mxu0 0
    %1443 = vmatprep.subr.bf16.mxu0 0
    %1444 = vmatpush2.bf16.msra.mxu0 0
    %1445 = vmatprep.subr.bf16.mxu0 0
    %1446 = vmatpush2.bf16.msra.mxu0 0
    %1447 = vmatprep.subr.bf16.mxu0 0
    %1448 = vmatpush2.bf16.msra.mxu0 0
    %1449 = vmatprep.subr.bf16.mxu0 0
    %1450 = vmatpush2.bf16.msra.mxu0 0
    %1451 = vmatprep.subr.bf16.mxu0 0
    %1452 = vmatpush2.bf16.msra.mxu0 0
    %1453 = vmatprep.mubr.bf16.mxu0 0
    %1454 = vmatmul.mubr.bf16.gmra.mxu0 %v1419
    %v1455 = vpop.f32.mrf.mxu0
    %v1456 = vadd.f32 0.0, %v1455
    %v1457 = vpop.f32.mrf.mxu0
    %v1458 = vpop.f32.mrf.mxu0
    %v1459 = vpop.f32.mrf.mxu0
    %1460 = vdwg.mxu0
    %v1461 = vadd.f32 %v993, %v1456
    %v1462 = vxor.u32 %v1461, 2147483648
    %v1463 = vmul.f32 %v1462, 1.442695
    %v1464 = vpow.pop %v1463
    %v1465 = vadd.f32 %v1464, 1.0
    %v1466 = vrcp.pop %v1465
    %v1467 = vmul.f32 1.0, %v1466
    %v1468 = vtanh.pop %v1461
    %v1469 = vmul.f32 %v1467, %v1407
    %1471 = vrot.lane.b32.xlu0 %v1468, 32
    %v1472 = vpop.permute.xlu0 %1471
    %v1474 = vmul.f32 %v1467, %v1472
    %1476 = vrot.lane.b32.xlu0 %v1474, 32
    %v1477 = vpop.permute.xlu0 %1476
    %v1479 = vadd.f32 %v1469, %v1477
    %v1480 = vtanh.pop %v1479
    %1482 = vrot.lane.b32.xlu0 %v1480, 32
    %v1483 = vpop.permute.xlu0 %1482
    %v1485 = vmul.f32 %v1467, %v1483
    %v1486 = vpack.c.bf16 %v1485, %v1485
    %1488 = vrot.lane.b32.xlu0 %v1486, 64
    %v1489 = vpop.permute.xlu0 %1488
    %v1491 = vsel %vm155, %v1489, 0
    %1493 = vmatprep.subr.bf16.mxu0 0
    %1494 = vmatpush1.bf16.msra.mxu0 0
    %1495 = vmatprep.subr.bf16.mxu0 0
    %1496 = vmatpush1.bf16.msra.mxu0 0
    %1497 = vmatprep.subr.bf16.mxu0 0
    %1498 = vmatpush1.bf16.msra.mxu0 0
    %1499 = vmatprep.subr.bf16.mxu0 0
    %1500 = vmatpush1.bf16.msra.mxu0 0
    %1501 = vmatprep.subr.bf16.mxu0 0
    %1502 = vmatpush1.bf16.msra.mxu0 0
    %1503 = vmatprep.subr.bf16.mxu0 0
    %1504 = vmatpush1.bf16.msra.mxu0 0
    %1505 = vmatprep.subr.bf16.mxu0 0
    %1506 = vmatpush1.bf16.msra.mxu0 %v1051
    %1507 = vmatprep.subr.bf16.mxu0 0
    %1508 = vmatpush1.bf16.msra.mxu0 %v1050
    %1509 = vmatprep.subr.bf16.mxu0 0
    %1510 = vmatpush2.bf16.msra.mxu0 0
    %1511 = vmatprep.subr.bf16.mxu0 0
    %1512 = vmatpush2.bf16.msra.mxu0 0
    %1513 = vmatprep.subr.bf16.mxu0 0
    %1514 = vmatpush2.bf16.msra.mxu0 0
    %1515 = vmatprep.subr.bf16.mxu0 0
    %1516 = vmatpush2.bf16.msra.mxu0 0
    %1517 = vmatprep.subr.bf16.mxu0 0
    %1518 = vmatpush2.bf16.msra.mxu0 0
    %1519 = vmatprep.subr.bf16.mxu0 0
    %1520 = vmatpush2.bf16.msra.mxu0 0
    %1521 = vmatprep.subr.bf16.mxu0 0
    %1522 = vmatpush2.bf16.msra.mxu0 0
    %1523 = vmatprep.subr.bf16.mxu0 0
    %1524 = vmatpush2.bf16.msra.mxu0 0
    %1525 = vmatprep.mubr.bf16.mxu0 0
    %1526 = vmatmul.mubr.bf16.gmra.mxu0 %v1491
    %v1527 = vpop.f32.mrf.mxu0
    %v1528 = vadd.f32 0.0, %v1527
    %v1529 = vpop.f32.mrf.mxu0
    %v1530 = vpop.f32.mrf.mxu0
    %v1531 = vpop.f32.mrf.mxu0
    %1532 = vdwg.mxu0
    %v1533 = vadd.f32 %v990, %v1528
    %v1534 = vxor.u32 %v1533, 2147483648
    %v1535 = vmul.f32 %v1534, 1.442695
    %v1536 = vpow.pop %v1535
    %v1537 = vadd.f32 %v1536, 1.0
    %v1538 = vrcp.pop %v1537
    %v1539 = vmul.f32 1.0, %v1538
    %v1540 = vtanh.pop %v1533
    %v1541 = vmul.f32 %v1539, %v1479
    %1543 = vrot.lane.b32.xlu0 %v1540, 32
    %v1544 = vpop.permute.xlu0 %1543
    %v1546 = vmul.f32 %v1539, %v1544
    %1548 = vrot.lane.b32.xlu0 %v1546, 32
    %v1549 = vpop.permute.xlu0 %1548
    %v1551 = vadd.f32 %v1541, %v1549
    %v1552 = vtanh.pop %v1551
    %1554 = vrot.lane.b32.xlu0 %v1552, 32
    %v1555 = vpop.permute.xlu0 %1554
    %v1557 = vmul.f32 %v1539, %v1555
    %v1558 = vld [vmem:[#allocation8 + $0x2] sm:$0x1]
    %v1559 = vlaneseq
    %v1560 = vshrl.u32 %v1559, 7
    %v1561 = vsub.s32 0, %v1560
    %v1562 = vrot.slane %v1558, %v1561
    %1564 = vrot.lane.b32.xlu0 %v1562, 64
    %v1565 = vpop.permute.xlu0 %1564
    %v1567 = vmul.f32 %v1557, %v1565
    %1569 = vrot.lane.b32.xlu0 %v1567, 64
    %v1570 = vpop.permute.xlu0 %1569
    %v1572 = vsel %vm155, %v1570, 0.0
    %1573 = vadd.xlane.f32.xlu0 %v1572
    %v1574 = vpop.xlane.xlu0 %1573
    %v1575 = vadd.f32 %v1574, %v1562
    %1577 = vrot.lane.b32.xlu0 %v1575, 96
    %v1578 = vpop.permute.xlu0 %1577
    %vm1580 = vcmask 7168
    %1581 = vst.msk [vmem:[%s3] sm:$0xff] %vm1580, %v1578
    // Predicated region
    $region26: #{lstm_model_forward.1} parent=1 // pred_check
      _
    $region27: #{lstm_model_forward.1} parent=1 // pred_check_branch
      %1583 = sbr.rel (0) target = $region29
    $region28: #{lstm_model_forward.1} parent=1 // pred_region
      _
    $region29: #{lstm_model_forward.1} parent=1 // pred_fallthru
      _
    // Predicated region
    $region30: #{lstm_model_forward.1} parent=1 // pred_check
      _
    $region31: #{lstm_model_forward.1} parent=1 // pred_check_branch
      %1585 = sbr.rel (0) target = $region33
    $region32: #{lstm_model_forward.1} parent=1 // pred_region
      _
    $region33: #{lstm_model_forward.1} parent=1 // pred_fallthru
      _
    %1586 = vsyncpa [#allocation5], 1
    %1587 = vsyncpa [#allocation7], 1

</llo_original>
